<compile_context>
chip_gen: v5e
topology: v5e:2x2
jax: 0.10.0
libtpu: 0.0.40
codegen_flags: <defaults>
</compile_context>

<pallas_src>
import jax
import jax.numpy as jnp
from jax import lax
from jax.experimental import pallas as pl
from jax.experimental.pallas import tpu as pltpu


def _tensorcores_per_chip():
    """Best-effort detection: v7x has 2 TensorCores per chip, v5e/v6e have 1."""
    try:
        kind = jax.devices()[0].device_kind.lower()
    except Exception:
        return 1
    if "v7" in kind or "7x" in kind:
        return 2
    return 1


def conv3x3_relu_pallas(x_nchw, weight_oihw, bias, *,
                        compute_dtype=jnp.bfloat16, images_per_step=None):
    """3x3 / stride-1 / pad-1 conv + ReLU.  x: (N, Cin, H, W) -> (N, Cout, H, W)."""
    N, Cin, H, W = x_nchw.shape
    Cout = weight_oihw.shape[0]
    M = H * W                          # flattened spatial = matmul lane axis (256)
    Kc = 3 * Cin                       # contraction depth per kh chunk (96)
    K = 3 * Kc                         # full im2col depth (288)
    Lp = M + 2 * W + 2                 # H-padded flat length (+1 guard lane/side)
    Lp_pad = ((Lp + 127) // 128) * 128 # lane-tile aligned input slab (384)

    # Images per grid step:
    #   * single-TC chips (v5e/v6e): fold the whole batch into one step
    #     (pays the ~0.35us step overhead once, one MXU weight push/drain,
    #     lane width N*256 stays fully lane-dense).
    #   * v7x (2 TCs): one image per step so both cores get a grid step.
    if images_per_step is None:
        tc = _tensorcores_per_chip()
        images_per_step = N // tc if (tc > 0 and N % tc == 0) else N
    G = max(1, images_per_step)
    assert N % G == 0
    steps = N // G
    GM = G * M                         # matmul width in lanes (256 or 512 here)

    # Channels-first, spatially flattened, H-padded once in the wrapper:
    #   buf[n, c, (W+1) + h*W + w] = x[n, c, h, w]; pad rows / guard lanes are 0.
    # For output index m = h*W + w and tap (kh, kw), the needed input sits at
    # lane m + s with s = kh*W + kw (a *static* lane offset).  kw=0 / kw=2 taps
    # wrap across row boundaries at w==0 / w==W-1 and are masked in-kernel.
    x_buf = jnp.pad(x_nchw.reshape(N, Cin, M),
                    ((0, 0), (0, 0), (W + 1, Lp_pad - M - (W + 1))))
    x_buf = x_buf.astype(compute_dtype)                       # (N, Cin, Lp_pad)

    # Weight: (Cout, Cin, 3, 3) -> (kh, Cout, kw*Cin + cin); each kh chunk is a
    # clean leading-index slab.  Column order matches the in-kernel patch rows.
    w3 = jnp.transpose(weight_oihw, (2, 0, 3, 1)).reshape(3, Cout, Kc)
    w3 = w3.astype(compute_dtype)
    b2 = bias.reshape(Cout, 1).astype(jnp.float32)

    out_dtype = x_nchw.dtype

    def kernel(x_ref, w_ref, b_ref, o_ref, patch_ref):
        # x_ref:     (G, Cin, Lp_pad)   padded flat inputs for this grid step
        # w_ref:     (3, Cout, Kc)      per-kh weight chunks (compute_dtype)
        # b_ref:     (Cout, 1)          f32 bias
        # o_ref:     (G, Cout, M)       lane-dense CHW output
        # patch_ref: (3, Kc, G*M) VMEM  im2col chunks (compute_dtype)
        w_idx = lax.broadcasted_iota(jnp.int32, (Cin, M), 1) % W
        left_ok = w_idx != 0           # kw == 0 reads w-1: invalid at w == 0
        right_ok = w_idx != (W - 1)    # kw == 2 reads w+1: invalid at w == W-1

        acc = jnp.zeros((Cout, GM), jnp.float32)
        # Per-kh chunk: stage the (Kc, G*M) patch slab with 3*G static
        # lane-offset slices, then one accumulated MXU dot.  Chunks live in
        # disjoint VMEM regions, so the dot for chunk kh can overlap the
        # staging stores of chunk kh+1.
        for kh in range(3):
            for kw in range(3):
                s = kh * W + kw                                # static lane offset
                for g in range(G):
                    tap = x_ref[g, :, s:s + M]                 # (Cin, M)
                    if kw == 0:
                        tap = jnp.where(left_ok, tap, 0)
                    elif kw == 2:
                        tap = jnp.where(right_ok, tap, 0)
                    patch_ref[kh, kw * Cin:(kw + 1) * Cin, g * M:(g + 1) * M] = tap
            acc = acc + jnp.dot(w_ref[kh], patch_ref[kh],
                                preferred_element_type=jnp.float32)

        res = jnp.maximum(acc + b_ref[...], 0.0)               # bias + ReLU
        for g in range(G):
            o_ref[g] = res[:, g * M:(g + 1) * M].astype(out_dtype)

    elt = jnp.dtype(compute_dtype).itemsize
    flops = 2 * N * Cout * K * M
    bytes_accessed = (elt * N * Cin * Lp_pad + elt * 3 * Cout * Kc
                      + 4 * Cout + 4 * N * Cout * M)

    out = pl.pallas_call(
        kernel,
        out_shape=jax.ShapeDtypeStruct((N, Cout, M), out_dtype),
        grid_spec=pltpu.PrefetchScalarGridSpec(
            num_scalar_prefetch=0,
            grid=(steps,),
            in_specs=[
                pl.BlockSpec((G, Cin, Lp_pad), lambda n: (n, 0, 0)),
                pl.BlockSpec((3, Cout, Kc), lambda n: (0, 0, 0)),
                pl.BlockSpec((Cout, 1), lambda n: (0, 0)),
            ],
            out_specs=pl.BlockSpec((G, Cout, M), lambda n: (n, 0, 0)),
            scratch_shapes=[pltpu.VMEM((3, Kc, GM), compute_dtype)],
        ),
        compiler_params=pltpu.CompilerParams(
            dimension_semantics=("parallel",)),    # 2-way grid feeds both v7x TCs
        cost_estimate=pl.CostEstimate(
            flops=flops, transcendentals=0, bytes_accessed=bytes_accessed),
    )(x_buf, w3, b2)

    # (N, Cout, H*W) -> (N, Cout, H, W): trailing-dim split at the model
    # boundary only (keep the lane-dense 256-wide layout when feeding other
    # TPU kernels downstream).
    return out.reshape(N, Cout, H, W)


def init_params(key, cin=32, cout=32, k=3):
    # Matches the module __init__: xavier_uniform_ weights, bias filled with 0.01.
    fan_in = cin * k * k
    fan_out = cout * k * k
    bound = (6.0 / (fan_in + fan_out)) ** 0.5
    weight = jax.random.uniform(key, (cout, cin, k, k),
                                minval=-bound, maxval=bound,
                                dtype=jnp.float32)
    bias = jnp.full((cout,), 0.01, dtype=jnp.float32)
    return weight, bias


if __name__ == "__main__":
    key = jax.random.PRNGKey(0)
    k_w, k_x = jax.random.split(key)

    # Conv2d(32 -> 32), batch=2, 16x16 spatial.
    N, C, H, W = 2, 32, 16, 16
    x = jax.random.normal(k_x, (N, C, H, W), dtype=jnp.float32)
    weight, bias = init_params(k_w)

    out = jax.block_until_ready(conv3x3_relu_pallas(x, weight, bias))
    assert out.shape == (N, C, H, W)

    def conv_ref(xx, ww):
        r = lax.conv_general_dilated(
            xx, ww, window_strides=(1, 1), padding="SAME",
            dimension_numbers=("NCHW", "OIHW", "NCHW"))
        return jnp.maximum(r + bias.reshape(1, -1, 1, 1), 0.0)

    # Tight check against a reference fed the same bf16-rounded inputs
    # (only the f32 accumulation order differs).
    ref_bf16 = conv_ref(x.astype(jnp.bfloat16).astype(jnp.float32),
                        weight.astype(jnp.bfloat16).astype(jnp.float32))
    assert jnp.allclose(out, ref_bf16, atol=2e-3, rtol=2e-3)

    # Sanity check against the full-f32 PyTorch-equivalent reference
    # (bf16 MXU inputs + f32 accumulation: standard TPU conv numerics).
    ref_f32 = conv_ref(x, weight)
    assert jnp.allclose(out, ref_f32, atol=3e-2, rtol=3e-2)

    print("KERNEL_OK")
</pallas_src>

<mosaic_0001>
module attributes {stable_mosaic.version = 11 : i64} {
  func.func @kernel(%arg0: i32, %arg1: memref<2x32x384xbf16, #tpu.memory_space<vmem>>, %arg2: memref<3x32x96xbf16, #tpu.memory_space<vmem>>, %arg3: memref<32x1xf32, #tpu.memory_space<vmem>>, %arg4: memref<2x32x256xf32, #tpu.memory_space<vmem>>, %arg5: memref<3x96x512xbf16, #tpu.memory_space<vmem>>) attributes {dimension_semantics = [#tpu.dimension_semantics<parallel>], iteration_bounds = array<i64: 1>, scalar_prefetch = 0 : i64, scratch_operands = 1 : i64, tpu.core_type = #tpu.core_type<tc>, window_params = [{transform_indices = @transform_0, window_bounds = array<i64: 2, 32, 384>}, {pipeline_mode = #tpu.pipeline_mode<synchronous>, transform_indices = @transform_1, window_bounds = array<i64: 3, 32, 96>}, {pipeline_mode = #tpu.pipeline_mode<synchronous>, transform_indices = @transform_2, window_bounds = array<i64: 32, 1>}, {transform_indices = @transform_3, window_bounds = array<i64: 2, 32, 256>}]} {
    %0 = tpu.iota {dimensions = array<i32: 1>} : vector<32x256xi32>
    %c16_i32 = arith.constant 16 : i32
    %c0_i32 = arith.constant 0 : i32
    %1 = arith.cmpi eq, %c16_i32, %c0_i32 : i32
    %c1_i32 = arith.constant 1 : i32
    %2 = arith.select %1, %c1_i32, %c16_i32 : i32
    %3 = vector.broadcast %2 : i32 to vector<32x256xi32>
    %4 = arith.remsi %0, %3 : vector<32x256xi32>
    %c0_i32_0 = arith.constant 0 : i32
    %5 = vector.broadcast %c0_i32_0 : i32 to vector<32x256xi32>
    %6 = arith.cmpi ne, %4, %5 : vector<32x256xi32>
    %c0_i32_1 = arith.constant 0 : i32
    %7 = vector.broadcast %c0_i32_1 : i32 to vector<32x256xi32>
    %8 = arith.cmpi slt, %4, %7 : vector<32x256xi32>
    %c0_i32_2 = arith.constant 0 : i32
    %9 = arith.cmpi slt, %2, %c0_i32_2 : i32
    %10 = vector.broadcast %9 : i1 to vector<32x256xi1>
    %11 = vector.broadcast %10 : vector<32x256xi1> to vector<32x256xi1>
    %12 = arith.xori %8, %11 : vector<32x256xi1>
    %13 = arith.andi %12, %6 : vector<32x256xi1>
    %14 = vector.broadcast %2 : i32 to vector<32x256xi32>
    %15 = arith.addi %4, %14 : vector<32x256xi32>
    %16 = arith.select %13, %15, %4 : vector<32x256xi1>, vector<32x256xi32>
    %c0_i32_3 = arith.constant 0 : i32
    %17 = vector.broadcast %c0_i32_3 : i32 to vector<32x256xi32>
    %18 = arith.cmpi ne, %16, %17 : vector<32x256xi32>
    %c15_i32 = arith.constant 15 : i32
    %19 = vector.broadcast %c15_i32 : i32 to vector<32x256xi32>
    %20 = arith.cmpi ne, %16, %19 : vector<32x256xi32>
    %cst = arith.constant 0.000000e+00 : f32
    %21 = vector.broadcast %cst : f32 to vector<32x512xf32>
    %c0 = arith.constant 0 : index
    %c0_4 = arith.constant 0 : index
    %c0_5 = arith.constant 0 : index
    %22 = vector.load %arg1[%c0, %c0_4, %c0_5] : memref<2x32x384xbf16, #tpu.memory_space<vmem>>, vector<1x32x256xbf16>
    %23 = vector.shape_cast %22 : vector<1x32x256xbf16> to vector<32x256xbf16>
    %c0_i32_6 = arith.constant 0 : i32
    %24 = arith.sitofp %c0_i32_6 : i32 to bf16
    %25 = vector.broadcast %24 : bf16 to vector<32x256xbf16>
    %26 = arith.select %18, %23, %25 : vector<32x256xi1>, vector<32x256xbf16>
    %c0_7 = arith.constant 0 : index
    %c0_8 = arith.constant 0 : index
    %c0_9 = arith.constant 0 : index
    %27 = vector.load %arg5[%c0_7, %c0_8, %c0_9] : memref<3x96x512xbf16, #tpu.memory_space<vmem>>, vector<1x32x256xbf16>
    %28 = vector.shape_cast %27 : vector<1x32x256xbf16> to vector<32x256xbf16>
    %29 = vector.shape_cast %26 : vector<32x256xbf16> to vector<1x32x256xbf16>
    tpu.vector_store %arg5[%c0_7, %c0_8, %c0_9], %29 {strides = array<i32>} : memref<3x96x512xbf16, #tpu.memory_space<vmem>>, vector<1x32x256xbf16>,
    %c1 = arith.constant 1 : index
    %c0_10 = arith.constant 0 : index
    %c0_11 = arith.constant 0 : index
    %30 = vector.load %arg1[%c1, %c0_10, %c0_11] : memref<2x32x384xbf16, #tpu.memory_space<vmem>>, vector<1x32x256xbf16>
    %31 = vector.shape_cast %30 : vector<1x32x256xbf16> to vector<32x256xbf16>
    %c0_i32_12 = arith.constant 0 : i32
    %32 = arith.sitofp %c0_i32_12 : i32 to bf16
    %33 = vector.broadcast %32 : bf16 to vector<32x256xbf16>
    %34 = arith.select %18, %31, %33 : vector<32x256xi1>, vector<32x256xbf16>
    %c0_13 = arith.constant 0 : index
    %c0_14 = arith.constant 0 : index
    %c256 = arith.constant 256 : index
    %35 = vector.load %arg5[%c0_13, %c0_14, %c256] : memref<3x96x512xbf16, #tpu.memory_space<vmem>>, vector<1x32x256xbf16>
    %36 = vector.shape_cast %35 : vector<1x32x256xbf16> to vector<32x256xbf16>
    %37 = vector.shape_cast %34 : vector<32x256xbf16> to vector<1x32x256xbf16>
    tpu.vector_store %arg5[%c0_13, %c0_14, %c256], %37 {strides = array<i32>} : memref<3x96x512xbf16, #tpu.memory_space<vmem>>, vector<1x32x256xbf16>,
    %c0_15 = arith.constant 0 : index
    %c0_16 = arith.constant 0 : index
    %c1_17 = arith.constant 1 : index
    %38 = vector.load %arg1[%c0_15, %c0_16, %c1_17] : memref<2x32x384xbf16, #tpu.memory_space<vmem>>, vector<1x32x256xbf16>
    %39 = vector.shape_cast %38 : vector<1x32x256xbf16> to vector<32x256xbf16>
    %c0_18 = arith.constant 0 : index
    %c32 = arith.constant 32 : index
    %c0_19 = arith.constant 0 : index
    %40 = vector.load %arg5[%c0_18, %c32, %c0_19] : memref<3x96x512xbf16, #tpu.memory_space<vmem>>, vector<1x32x256xbf16>
    %41 = vector.shape_cast %40 : vector<1x32x256xbf16> to vector<32x256xbf16>
    %42 = vector.shape_cast %39 : vector<32x256xbf16> to vector<1x32x256xbf16>
    tpu.vector_store %arg5[%c0_18, %c32, %c0_19], %42 {strides = array<i32>} : memref<3x96x512xbf16, #tpu.memory_space<vmem>>, vector<1x32x256xbf16>,
    %c1_20 = arith.constant 1 : index
    %c0_21 = arith.constant 0 : index
    %c1_22 = arith.constant 1 : index
    %43 = vector.load %arg1[%c1_20, %c0_21, %c1_22] : memref<2x32x384xbf16, #tpu.memory_space<vmem>>, vector<1x32x256xbf16>
    %44 = vector.shape_cast %43 : vector<1x32x256xbf16> to vector<32x256xbf16>
    %c0_23 = arith.constant 0 : index
    %c32_24 = arith.constant 32 : index
    %c256_25 = arith.constant 256 : index
    %45 = vector.load %arg5[%c0_23, %c32_24, %c256_25] : memref<3x96x512xbf16, #tpu.memory_space<vmem>>, vector<1x32x256xbf16>
    %46 = vector.shape_cast %45 : vector<1x32x256xbf16> to vector<32x256xbf16>
    %47 = vector.shape_cast %44 : vector<32x256xbf16> to vector<1x32x256xbf16>
    tpu.vector_store %arg5[%c0_23, %c32_24, %c256_25], %47 {strides = array<i32>} : memref<3x96x512xbf16, #tpu.memory_space<vmem>>, vector<1x32x256xbf16>,
    %c0_26 = arith.constant 0 : index
    %c0_27 = arith.constant 0 : index
    %c2 = arith.constant 2 : index
    %48 = vector.load %arg1[%c0_26, %c0_27, %c2] : memref<2x32x384xbf16, #tpu.memory_space<vmem>>, vector<1x32x256xbf16>
    %49 = vector.shape_cast %48 : vector<1x32x256xbf16> to vector<32x256xbf16>
    %c0_i32_28 = arith.constant 0 : i32
    %50 = arith.sitofp %c0_i32_28 : i32 to bf16
    %51 = vector.broadcast %50 : bf16 to vector<32x256xbf16>
    %52 = arith.select %20, %49, %51 : vector<32x256xi1>, vector<32x256xbf16>
    %c0_29 = arith.constant 0 : index
    %c64 = arith.constant 64 : index
    %c0_30 = arith.constant 0 : index
    %53 = vector.load %arg5[%c0_29, %c64, %c0_30] : memref<3x96x512xbf16, #tpu.memory_space<vmem>>, vector<1x32x256xbf16>
    %54 = vector.shape_cast %53 : vector<1x32x256xbf16> to vector<32x256xbf16>
    %55 = vector.shape_cast %52 : vector<32x256xbf16> to vector<1x32x256xbf16>
    tpu.vector_store %arg5[%c0_29, %c64, %c0_30], %55 {strides = array<i32>} : memref<3x96x512xbf16, #tpu.memory_space<vmem>>, vector<1x32x256xbf16>,
    %c1_31 = arith.constant 1 : index
    %c0_32 = arith.constant 0 : index
    %c2_33 = arith.constant 2 : index
    %56 = vector.load %arg1[%c1_31, %c0_32, %c2_33] : memref<2x32x384xbf16, #tpu.memory_space<vmem>>, vector<1x32x256xbf16>
    %57 = vector.shape_cast %56 : vector<1x32x256xbf16> to vector<32x256xbf16>
    %c0_i32_34 = arith.constant 0 : i32
    %58 = arith.sitofp %c0_i32_34 : i32 to bf16
    %59 = vector.broadcast %58 : bf16 to vector<32x256xbf16>
    %60 = arith.select %20, %57, %59 : vector<32x256xi1>, vector<32x256xbf16>
    %c0_35 = arith.constant 0 : index
    %c64_36 = arith.constant 64 : index
    %c256_37 = arith.constant 256 : index
    %61 = vector.load %arg5[%c0_35, %c64_36, %c256_37] : memref<3x96x512xbf16, #tpu.memory_space<vmem>>, vector<1x32x256xbf16>
    %62 = vector.shape_cast %61 : vector<1x32x256xbf16> to vector<32x256xbf16>
    %63 = vector.shape_cast %60 : vector<32x256xbf16> to vector<1x32x256xbf16>
    tpu.vector_store %arg5[%c0_35, %c64_36, %c256_37], %63 {strides = array<i32>} : memref<3x96x512xbf16, #tpu.memory_space<vmem>>, vector<1x32x256xbf16>,
    %c0_38 = arith.constant 0 : index
    %c0_39 = arith.constant 0 : index
    %c0_40 = arith.constant 0 : index
    %64 = vector.load %arg2[%c0_38, %c0_39, %c0_40] : memref<3x32x96xbf16, #tpu.memory_space<vmem>>, vector<1x32x96xbf16>
    %65 = vector.shape_cast %64 : vector<1x32x96xbf16> to vector<32x96xbf16>
    %c0_41 = arith.constant 0 : index
    %c0_42 = arith.constant 0 : index
    %c0_43 = arith.constant 0 : index
    %66 = vector.load %arg5[%c0_41, %c0_42, %c0_43] : memref<3x96x512xbf16, #tpu.memory_space<vmem>>, vector<1x96x512xbf16>
    %67 = vector.shape_cast %66 : vector<1x96x512xbf16> to vector<96x512xbf16>
    %cst_44 = arith.constant dense<0.000000e+00> : vector<32x512xf32>
    %68 = tpu.matmul %65, %67, %cst_44 {dimension_numbers = #tpu.dot_dimension_numbers<[1], [0], [0], [1], [0, 0, 1, 1], [], []>} : vector<32x96xbf16>, vector<96x512xbf16>, vector<32x512xf32> -> vector<32x512xf32>
    %69 = arith.addf %21, %68 : vector<32x512xf32>
    %c0_45 = arith.constant 0 : index
    %c0_46 = arith.constant 0 : index
    %c16 = arith.constant 16 : index
    %70 = vector.load %arg1[%c0_45, %c0_46, %c16] : memref<2x32x384xbf16, #tpu.memory_space<vmem>>, vector<1x32x256xbf16>
    %71 = vector.shape_cast %70 : vector<1x32x256xbf16> to vector<32x256xbf16>
    %c0_i32_47 = arith.constant 0 : i32
    %72 = arith.sitofp %c0_i32_47 : i32 to bf16
    %73 = vector.broadcast %72 : bf16 to vector<32x256xbf16>
    %74 = arith.select %18, %71, %73 : vector<32x256xi1>, vector<32x256xbf16>
    %c1_48 = arith.constant 1 : index
    %c0_49 = arith.constant 0 : index
    %c0_50 = arith.constant 0 : index
    %75 = vector.load %arg5[%c1_48, %c0_49, %c0_50] : memref<3x96x512xbf16, #tpu.memory_space<vmem>>, vector<1x32x256xbf16>
    %76 = vector.shape_cast %75 : vector<1x32x256xbf16> to vector<32x256xbf16>
    %77 = vector.shape_cast %74 : vector<32x256xbf16> to vector<1x32x256xbf16>
    tpu.vector_store %arg5[%c1_48, %c0_49, %c0_50], %77 {strides = array<i32>} : memref<3x96x512xbf16, #tpu.memory_space<vmem>>, vector<1x32x256xbf16>,
    %c1_51 = arith.constant 1 : index
    %c0_52 = arith.constant 0 : index
    %c16_53 = arith.constant 16 : index
    %78 = vector.load %arg1[%c1_51, %c0_52, %c16_53] : memref<2x32x384xbf16, #tpu.memory_space<vmem>>, vector<1x32x256xbf16>
    %79 = vector.shape_cast %78 : vector<1x32x256xbf16> to vector<32x256xbf16>
    %c0_i32_54 = arith.constant 0 : i32
    %80 = arith.sitofp %c0_i32_54 : i32 to bf16
    %81 = vector.broadcast %80 : bf16 to vector<32x256xbf16>
    %82 = arith.select %18, %79, %81 : vector<32x256xi1>, vector<32x256xbf16>
    %c1_55 = arith.constant 1 : index
    %c0_56 = arith.constant 0 : index
    %c256_57 = arith.constant 256 : index
    %83 = vector.load %arg5[%c1_55, %c0_56, %c256_57] : memref<3x96x512xbf16, #tpu.memory_space<vmem>>, vector<1x32x256xbf16>
    %84 = vector.shape_cast %83 : vector<1x32x256xbf16> to vector<32x256xbf16>
    %85 = vector.shape_cast %82 : vector<32x256xbf16> to vector<1x32x256xbf16>
    tpu.vector_store %arg5[%c1_55, %c0_56, %c256_57], %85 {strides = array<i32>} : memref<3x96x512xbf16, #tpu.memory_space<vmem>>, vector<1x32x256xbf16>,
    %c0_58 = arith.constant 0 : index
    %c0_59 = arith.constant 0 : index
    %c17 = arith.constant 17 : index
    %86 = vector.load %arg1[%c0_58, %c0_59, %c17] : memref<2x32x384xbf16, #tpu.memory_space<vmem>>, vector<1x32x256xbf16>
    %87 = vector.shape_cast %86 : vector<1x32x256xbf16> to vector<32x256xbf16>
    %c1_60 = arith.constant 1 : index
    %c32_61 = arith.constant 32 : index
    %c0_62 = arith.constant 0 : index
    %88 = vector.load %arg5[%c1_60, %c32_61, %c0_62] : memref<3x96x512xbf16, #tpu.memory_space<vmem>>, vector<1x32x256xbf16>
    %89 = vector.shape_cast %88 : vector<1x32x256xbf16> to vector<32x256xbf16>
    %90 = vector.shape_cast %87 : vector<32x256xbf16> to vector<1x32x256xbf16>
    tpu.vector_store %arg5[%c1_60, %c32_61, %c0_62], %90 {strides = array<i32>} : memref<3x96x512xbf16, #tpu.memory_space<vmem>>, vector<1x32x256xbf16>,
    %c1_63 = arith.constant 1 : index
    %c0_64 = arith.constant 0 : index
    %c17_65 = arith.constant 17 : index
    %91 = vector.load %arg1[%c1_63, %c0_64, %c17_65] : memref<2x32x384xbf16, #tpu.memory_space<vmem>>, vector<1x32x256xbf16>
    %92 = vector.shape_cast %91 : vector<1x32x256xbf16> to vector<32x256xbf16>
    %c1_66 = arith.constant 1 : index
    %c32_67 = arith.constant 32 : index
    %c256_68 = arith.constant 256 : index
    %93 = vector.load %arg5[%c1_66, %c32_67, %c256_68] : memref<3x96x512xbf16, #tpu.memory_space<vmem>>, vector<1x32x256xbf16>
    %94 = vector.shape_cast %93 : vector<1x32x256xbf16> to vector<32x256xbf16>
    %95 = vector.shape_cast %92 : vector<32x256xbf16> to vector<1x32x256xbf16>
    tpu.vector_store %arg5[%c1_66, %c32_67, %c256_68], %95 {strides = array<i32>} : memref<3x96x512xbf16, #tpu.memory_space<vmem>>, vector<1x32x256xbf16>,
    %c0_69 = arith.constant 0 : index
    %c0_70 = arith.constant 0 : index
    %c18 = arith.constant 18 : index
    %96 = vector.load %arg1[%c0_69, %c0_70, %c18] : memref<2x32x384xbf16, #tpu.memory_space<vmem>>, vector<1x32x256xbf16>
    %97 = vector.shape_cast %96 : vector<1x32x256xbf16> to vector<32x256xbf16>
    %c0_i32_71 = arith.constant 0 : i32
    %98 = arith.sitofp %c0_i32_71 : i32 to bf16
    %99 = vector.broadcast %98 : bf16 to vector<32x256xbf16>
    %100 = arith.select %20, %97, %99 : vector<32x256xi1>, vector<32x256xbf16>
    %c1_72 = arith.constant 1 : index
    %c64_73 = arith.constant 64 : index
    %c0_74 = arith.constant 0 : index
    %101 = vector.load %arg5[%c1_72, %c64_73, %c0_74] : memref<3x96x512xbf16, #tpu.memory_space<vmem>>, vector<1x32x256xbf16>
    %102 = vector.shape_cast %101 : vector<1x32x256xbf16> to vector<32x256xbf16>
    %103 = vector.shape_cast %100 : vector<32x256xbf16> to vector<1x32x256xbf16>
    tpu.vector_store %arg5[%c1_72, %c64_73, %c0_74], %103 {strides = array<i32>} : memref<3x96x512xbf16, #tpu.memory_space<vmem>>, vector<1x32x256xbf16>,
    %c1_75 = arith.constant 1 : index
    %c0_76 = arith.constant 0 : index
    %c18_77 = arith.constant 18 : index
    %104 = vector.load %arg1[%c1_75, %c0_76, %c18_77] : memref<2x32x384xbf16, #tpu.memory_space<vmem>>, vector<1x32x256xbf16>
    %105 = vector.shape_cast %104 : vector<1x32x256xbf16> to vector<32x256xbf16>
    %c0_i32_78 = arith.constant 0 : i32
    %106 = arith.sitofp %c0_i32_78 : i32 to bf16
    %107 = vector.broadcast %106 : bf16 to vector<32x256xbf16>
    %108 = arith.select %20, %105, %107 : vector<32x256xi1>, vector<32x256xbf16>
    %c1_79 = arith.constant 1 : index
    %c64_80 = arith.constant 64 : index
    %c256_81 = arith.constant 256 : index
    %109 = vector.load %arg5[%c1_79, %c64_80, %c256_81] : memref<3x96x512xbf16, #tpu.memory_space<vmem>>, vector<1x32x256xbf16>
    %110 = vector.shape_cast %109 : vector<1x32x256xbf16> to vector<32x256xbf16>
    %111 = vector.shape_cast %108 : vector<32x256xbf16> to vector<1x32x256xbf16>
    tpu.vector_store %arg5[%c1_79, %c64_80, %c256_81], %111 {strides = array<i32>} : memref<3x96x512xbf16, #tpu.memory_space<vmem>>, vector<1x32x256xbf16>,
    %c1_82 = arith.constant 1 : index
    %c0_83 = arith.constant 0 : index
    %c0_84 = arith.constant 0 : index
    %112 = vector.load %arg2[%c1_82, %c0_83, %c0_84] : memref<3x32x96xbf16, #tpu.memory_space<vmem>>, vector<1x32x96xbf16>
    %113 = vector.shape_cast %112 : vector<1x32x96xbf16> to vector<32x96xbf16>
    %c1_85 = arith.constant 1 : index
    %c0_86 = arith.constant 0 : index
    %c0_87 = arith.constant 0 : index
    %114 = vector.load %arg5[%c1_85, %c0_86, %c0_87] : memref<3x96x512xbf16, #tpu.memory_space<vmem>>, vector<1x96x512xbf16>
    %115 = vector.shape_cast %114 : vector<1x96x512xbf16> to vector<96x512xbf16>
    %cst_88 = arith.constant dense<0.000000e+00> : vector<32x512xf32>
    %116 = tpu.matmul %113, %115, %cst_88 {dimension_numbers = #tpu.dot_dimension_numbers<[1], [0], [0], [1], [0, 0, 1, 1], [], []>} : vector<32x96xbf16>, vector<96x512xbf16>, vector<32x512xf32> -> vector<32x512xf32>
    %117 = arith.addf %69, %116 : vector<32x512xf32>
    %c0_89 = arith.constant 0 : index
    %c0_90 = arith.constant 0 : index
    %c32_91 = arith.constant 32 : index
    %118 = vector.load %arg1[%c0_89, %c0_90, %c32_91] : memref<2x32x384xbf16, #tpu.memory_space<vmem>>, vector<1x32x256xbf16>
    %119 = vector.shape_cast %118 : vector<1x32x256xbf16> to vector<32x256xbf16>
    %c0_i32_92 = arith.constant 0 : i32
    %120 = arith.sitofp %c0_i32_92 : i32 to bf16
    %121 = vector.broadcast %120 : bf16 to vector<32x256xbf16>
    %122 = arith.select %18, %119, %121 : vector<32x256xi1>, vector<32x256xbf16>
    %c2_93 = arith.constant 2 : index
    %c0_94 = arith.constant 0 : index
    %c0_95 = arith.constant 0 : index
    %123 = vector.load %arg5[%c2_93, %c0_94, %c0_95] : memref<3x96x512xbf16, #tpu.memory_space<vmem>>, vector<1x32x256xbf16>
    %124 = vector.shape_cast %123 : vector<1x32x256xbf16> to vector<32x256xbf16>
    %125 = vector.shape_cast %122 : vector<32x256xbf16> to vector<1x32x256xbf16>
    tpu.vector_store %arg5[%c2_93, %c0_94, %c0_95], %125 {strides = array<i32>} : memref<3x96x512xbf16, #tpu.memory_space<vmem>>, vector<1x32x256xbf16>,
    %c1_96 = arith.constant 1 : index
    %c0_97 = arith.constant 0 : index
    %c32_98 = arith.constant 32 : index
    %126 = vector.load %arg1[%c1_96, %c0_97, %c32_98] : memref<2x32x384xbf16, #tpu.memory_space<vmem>>, vector<1x32x256xbf16>
    %127 = vector.shape_cast %126 : vector<1x32x256xbf16> to vector<32x256xbf16>
    %c0_i32_99 = arith.constant 0 : i32
    %128 = arith.sitofp %c0_i32_99 : i32 to bf16
    %129 = vector.broadcast %128 : bf16 to vector<32x256xbf16>
    %130 = arith.select %18, %127, %129 : vector<32x256xi1>, vector<32x256xbf16>
    %c2_100 = arith.constant 2 : index
    %c0_101 = arith.constant 0 : index
    %c256_102 = arith.constant 256 : index
    %131 = vector.load %arg5[%c2_100, %c0_101, %c256_102] : memref<3x96x512xbf16, #tpu.memory_space<vmem>>, vector<1x32x256xbf16>
    %132 = vector.shape_cast %131 : vector<1x32x256xbf16> to vector<32x256xbf16>
    %133 = vector.shape_cast %130 : vector<32x256xbf16> to vector<1x32x256xbf16>
    tpu.vector_store %arg5[%c2_100, %c0_101, %c256_102], %133 {strides = array<i32>} : memref<3x96x512xbf16, #tpu.memory_space<vmem>>, vector<1x32x256xbf16>,
    %c0_103 = arith.constant 0 : index
    %c0_104 = arith.constant 0 : index
    %c33 = arith.constant 33 : index
    %134 = vector.load %arg1[%c0_103, %c0_104, %c33] : memref<2x32x384xbf16, #tpu.memory_space<vmem>>, vector<1x32x256xbf16>
    %135 = vector.shape_cast %134 : vector<1x32x256xbf16> to vector<32x256xbf16>
    %c2_105 = arith.constant 2 : index
    %c32_106 = arith.constant 32 : index
    %c0_107 = arith.constant 0 : index
    %136 = vector.load %arg5[%c2_105, %c32_106, %c0_107] : memref<3x96x512xbf16, #tpu.memory_space<vmem>>, vector<1x32x256xbf16>
    %137 = vector.shape_cast %136 : vector<1x32x256xbf16> to vector<32x256xbf16>
    %138 = vector.shape_cast %135 : vector<32x256xbf16> to vector<1x32x256xbf16>
    tpu.vector_store %arg5[%c2_105, %c32_106, %c0_107], %138 {strides = array<i32>} : memref<3x96x512xbf16, #tpu.memory_space<vmem>>, vector<1x32x256xbf16>,
    %c1_108 = arith.constant 1 : index
    %c0_109 = arith.constant 0 : index
    %c33_110 = arith.constant 33 : index
    %139 = vector.load %arg1[%c1_108, %c0_109, %c33_110] : memref<2x32x384xbf16, #tpu.memory_space<vmem>>, vector<1x32x256xbf16>
    %140 = vector.shape_cast %139 : vector<1x32x256xbf16> to vector<32x256xbf16>
    %c2_111 = arith.constant 2 : index
    %c32_112 = arith.constant 32 : index
    %c256_113 = arith.constant 256 : index
    %141 = vector.load %arg5[%c2_111, %c32_112, %c256_113] : memref<3x96x512xbf16, #tpu.memory_space<vmem>>, vector<1x32x256xbf16>
    %142 = vector.shape_cast %141 : vector<1x32x256xbf16> to vector<32x256xbf16>
    %143 = vector.shape_cast %140 : vector<32x256xbf16> to vector<1x32x256xbf16>
    tpu.vector_store %arg5[%c2_111, %c32_112, %c256_113], %143 {strides = array<i32>} : memref<3x96x512xbf16, #tpu.memory_space<vmem>>, vector<1x32x256xbf16>,
    %c0_114 = arith.constant 0 : index
    %c0_115 = arith.constant 0 : index
    %c34 = arith.constant 34 : index
    %144 = vector.load %arg1[%c0_114, %c0_115, %c34] : memref<2x32x384xbf16, #tpu.memory_space<vmem>>, vector<1x32x256xbf16>
    %145 = vector.shape_cast %144 : vector<1x32x256xbf16> to vector<32x256xbf16>
    %c0_i32_116 = arith.constant 0 : i32
    %146 = arith.sitofp %c0_i32_116 : i32 to bf16
    %147 = vector.broadcast %146 : bf16 to vector<32x256xbf16>
    %148 = arith.select %20, %145, %147 : vector<32x256xi1>, vector<32x256xbf16>
    %c2_117 = arith.constant 2 : index
    %c64_118 = arith.constant 64 : index
    %c0_119 = arith.constant 0 : index
    %149 = vector.load %arg5[%c2_117, %c64_118, %c0_119] : memref<3x96x512xbf16, #tpu.memory_space<vmem>>, vector<1x32x256xbf16>
    %150 = vector.shape_cast %149 : vector<1x32x256xbf16> to vector<32x256xbf16>
    %151 = vector.shape_cast %148 : vector<32x256xbf16> to vector<1x32x256xbf16>
    tpu.vector_store %arg5[%c2_117, %c64_118, %c0_119], %151 {strides = array<i32>} : memref<3x96x512xbf16, #tpu.memory_space<vmem>>, vector<1x32x256xbf16>,
    %c1_120 = arith.constant 1 : index
    %c0_121 = arith.constant 0 : index
    %c34_122 = arith.constant 34 : index
    %152 = vector.load %arg1[%c1_120, %c0_121, %c34_122] : memref<2x32x384xbf16, #tpu.memory_space<vmem>>, vector<1x32x256xbf16>
    %153 = vector.shape_cast %152 : vector<1x32x256xbf16> to vector<32x256xbf16>
    %c0_i32_123 = arith.constant 0 : i32
    %154 = arith.sitofp %c0_i32_123 : i32 to bf16
    %155 = vector.broadcast %154 : bf16 to vector<32x256xbf16>
    %156 = arith.select %20, %153, %155 : vector<32x256xi1>, vector<32x256xbf16>
    %c2_124 = arith.constant 2 : index
    %c64_125 = arith.constant 64 : index
    %c256_126 = arith.constant 256 : index
    %157 = vector.load %arg5[%c2_124, %c64_125, %c256_126] : memref<3x96x512xbf16, #tpu.memory_space<vmem>>, vector<1x32x256xbf16>
    %158 = vector.shape_cast %157 : vector<1x32x256xbf16> to vector<32x256xbf16>
    %159 = vector.shape_cast %156 : vector<32x256xbf16> to vector<1x32x256xbf16>
    tpu.vector_store %arg5[%c2_124, %c64_125, %c256_126], %159 {strides = array<i32>} : memref<3x96x512xbf16, #tpu.memory_space<vmem>>, vector<1x32x256xbf16>,
    %c2_127 = arith.constant 2 : index
    %c0_128 = arith.constant 0 : index
    %c0_129 = arith.constant 0 : index
    %160 = vector.load %arg2[%c2_127, %c0_128, %c0_129] : memref<3x32x96xbf16, #tpu.memory_space<vmem>>, vector<1x32x96xbf16>
    %161 = vector.shape_cast %160 : vector<1x32x96xbf16> to vector<32x96xbf16>
    %c2_130 = arith.constant 2 : index
    %c0_131 = arith.constant 0 : index
    %c0_132 = arith.constant 0 : index
    %162 = vector.load %arg5[%c2_130, %c0_131, %c0_132] : memref<3x96x512xbf16, #tpu.memory_space<vmem>>, vector<1x96x512xbf16>
    %163 = vector.shape_cast %162 : vector<1x96x512xbf16> to vector<96x512xbf16>
    %cst_133 = arith.constant dense<0.000000e+00> : vector<32x512xf32>
    %164 = tpu.matmul %161, %163, %cst_133 {dimension_numbers = #tpu.dot_dimension_numbers<[1], [0], [0], [1], [0, 0, 1, 1], [], []>} : vector<32x96xbf16>, vector<96x512xbf16>, vector<32x512xf32> -> vector<32x512xf32>
    %165 = arith.addf %117, %164 : vector<32x512xf32>
    %c0_134 = arith.constant 0 : index
    %c0_135 = arith.constant 0 : index
    %166 = vector.load %arg3[%c0_134, %c0_135] : memref<32x1xf32, #tpu.memory_space<vmem>>, vector<32x1xf32>
    %167 = vector.broadcast %166 : vector<32x1xf32> to vector<32x512xf32>
    %168 = arith.addf %165, %167 : vector<32x512xf32>
    %cst_136 = arith.constant 0.000000e+00 : f32
    %169 = vector.broadcast %cst_136 : f32 to vector<32x512xf32>
    %170 = arith.maximumf %168, %169 : vector<32x512xf32>
    %171 = vector.extract_strided_slice %170 {offsets = [0, 0], sizes = [32, 256], strides = [1, 1]} : vector<32x512xf32> to vector<32x256xf32>
    %c0_137 = arith.constant 0 : index
    %c0_138 = arith.constant 0 : index
    %c0_139 = arith.constant 0 : index
    %172 = vector.load %arg4[%c0_137, %c0_138, %c0_139] : memref<2x32x256xf32, #tpu.memory_space<vmem>>, vector<1x32x256xf32>
    %173 = vector.shape_cast %172 : vector<1x32x256xf32> to vector<32x256xf32>
    %174 = vector.shape_cast %171 : vector<32x256xf32> to vector<1x32x256xf32>
    tpu.vector_store %arg4[%c0_137, %c0_138, %c0_139], %174 {strides = array<i32>} : memref<2x32x256xf32, #tpu.memory_space<vmem>>, vector<1x32x256xf32>,
    %175 = vector.extract_strided_slice %170 {offsets = [0, 256], sizes = [32, 256], strides = [1, 1]} : vector<32x512xf32> to vector<32x256xf32>
    %c1_140 = arith.constant 1 : index
    %c0_141 = arith.constant 0 : index
    %c0_142 = arith.constant 0 : index
    %176 = vector.load %arg4[%c1_140, %c0_141, %c0_142] : memref<2x32x256xf32, #tpu.memory_space<vmem>>, vector<1x32x256xf32>
    %177 = vector.shape_cast %176 : vector<1x32x256xf32> to vector<32x256xf32>
    %178 = vector.shape_cast %175 : vector<32x256xf32> to vector<1x32x256xf32>
    tpu.vector_store %arg4[%c1_140, %c0_141, %c0_142], %178 {strides = array<i32>} : memref<2x32x256xf32, #tpu.memory_space<vmem>>, vector<1x32x256xf32>,
    return
  }
  func.func @transform_0(%arg0: i32) -> (i32, i32, i32) {
    %c0_i32 = arith.constant 0 : i32
    %c0_i32_0 = arith.constant 0 : i32
    %c0_i32_1 = arith.constant 0 : i32
    return %arg0, %c0_i32, %c0_i32_0 : i32, i32, i32
  }
  func.func @transform_1(%arg0: i32) -> (i32, i32, i32) {
    %c0_i32 = arith.constant 0 : i32
    %c0_i32_0 = arith.constant 0 : i32
    %c0_i32_1 = arith.constant 0 : i32
    %c0_i32_2 = arith.constant 0 : i32
    return %c0_i32, %c0_i32_0, %c0_i32_1 : i32, i32, i32
  }
  func.func @transform_2(%arg0: i32) -> (i32, i32) {
    %c0_i32 = arith.constant 0 : i32
    %c0_i32_0 = arith.constant 0 : i32
    %c0_i32_1 = arith.constant 0 : i32
    return %c0_i32, %c0_i32_0 : i32, i32
  }
  func.func @transform_3(%arg0: i32) -> (i32, i32, i32) {
    %c0_i32 = arith.constant 0 : i32
    %c0_i32_0 = arith.constant 0 : i32
    %c0_i32_1 = arith.constant 0 : i32
    return %arg0, %c0_i32, %c0_i32_0 : i32, i32, i32
  }
}

</mosaic_0001>

<llo_original>
// kernel: tpu_custom_call.1
$region0: #{tpu_custom_call.1}
  #allocation0 [shape = 'u32[]', space=smem, size = 0x4, offset = 0x4, fixed_abs, tag = 'smem constant byte address 0x4 - core index']
  #allocation1 [shape = 'u32[72,128]{1,0:T(1,128)}', space=vmem, size = 0x9000, scoped, tag = 'internal scratch']
  #allocation2 [shape = 'bf16[3,96,512]{2,1,0:T(8,128)(2,1)}', space=vmem, size = 0x48000, scoped, tag = 'scratch operand']
  %s0 = inlined_call_operand.hbm [shape: bf16[2,32,384], index: 0, kind: input, shape index: {}]
  %s1 = inlined_call_operand.hbm [shape: bf16[3,32,96], index: 1, kind: input, shape index: {}]
  %s2 = inlined_call_operand.vmem [shape: f32[32,1], index: 2, kind: input, shape index: {}]
  %s3 = inlined_call_operand.hbm [shape: f32[2,32,256], index: 3, kind: output, shape index: {}]
  %s4 = sld [smem:[#allocation0]]
  $region30: #{tpu_custom_call.1} parent=0
    _
  %s6 = ssub.s32 1, %s4
  %s7 = scalar_select 0, %s6, %s4
  $region1: #{tpu_custom_call.1} parent=0
    #allocation3 [shape = 'u8[49152]{0}', space=vmem, size = 0xc000, scoped, tag = 'input window, operand 0, single buffered']
    #allocation4 [shape = 's32[1]{0}', space=sflag, size = 0x4, scoped, tag = 'scoped memory for tpu_custom_call.1']
    #allocation5 [shape = 's32[1]{0}', space=sflag, size = 0x4, scoped, tag = 'scoped memory for tpu_custom_call.1']
    #allocation6 [shape = 'u8[24576]{0}', space=vmem, size = 0x6000, scoped, tag = 'input window, operand 1, single buffered']
    #allocation7 [shape = 's32[1]{0}', space=sflag, size = 0x4, scoped, tag = 'scoped memory for tpu_custom_call.1']
    #allocation8 [shape = 'u8[65536]{0}', space=vmem, size = 0x10000, scoped, tag = 'output window, operand 0, single buffered']
    %8 = vsyncpa [#allocation4], 0
    %9 = vsyncpa [#allocation7], 0
    %10 = vsyncpa [#allocation5], 0
    // Predicated region
    $region2: #{tpu_custom_call.1} parent=1 // pred_check
      _
    $region3: #{tpu_custom_call.1} parent=1 // pred_check_branch
      %12 = sbr.rel (0) target = $region5
    $region4: #{tpu_custom_call.1} parent=1 // pred_region
      %14 = vsyncadd [#allocation4], 0
      %s15 = sshll.u32 %s0, 4
      %s16 = int_to_ptr.hbm [resolvable:$true] %s15
      %s17 = sshll.u32 [#allocation3], 4
      %s18 = int_to_ptr.vmem [resolvable:$true] %s17
      %23 = dma.hbm_to_vmem [thread:$0]  %s16, 1536, %s18, [#allocation4], 192, 192, 12
    $region5: #{tpu_custom_call.1} parent=1 // pred_fallthru
      _
    // Predicated region
    $region6: #{tpu_custom_call.1} parent=1 // pred_check
      _
    $region7: #{tpu_custom_call.1} parent=1 // pred_check_branch
      %25 = sbr.rel (0) target = $region9
    $region8: #{tpu_custom_call.1} parent=1 // pred_region
      %27 = vsyncadd [#allocation7], 0
      %s28 = sshll.u32 %s1, 4
      %s29 = int_to_ptr.hbm [resolvable:$true] %s28
      %s30 = sshll.u32 [#allocation6], 4
      %s31 = int_to_ptr.vmem [resolvable:$true] %s30
      %36 = dma.hbm_to_vmem [thread:$0]  %s29, 768, %s31, [#allocation7], 64, 64, 4
    $region9: #{tpu_custom_call.1} parent=1 // pred_fallthru
      _
    // Predicated region
    $region10: #{tpu_custom_call.1} parent=1 // pred_check
      _
    $region11: #{tpu_custom_call.1} parent=1 // pred_check_branch
      %38 = sbr.rel (0) target = $region13
    $region12: #{tpu_custom_call.1} parent=1 // pred_region
      _
    $region13: #{tpu_custom_call.1} parent=1 // pred_fallthru
      _
    // Predicated region
    $region14: #{tpu_custom_call.1} parent=1 // pred_check
      _
    $region15: #{tpu_custom_call.1} parent=1 // pred_check_branch
      %40 = sbr.rel (0) target = $region17
    $region16: #{tpu_custom_call.1} parent=1 // pred_region
      %42 = dma.done [#allocation4], 1536
    $region17: #{tpu_custom_call.1} parent=1 // pred_fallthru
      _
    // Predicated region
    $region18: #{tpu_custom_call.1} parent=1 // pred_check
      _
    $region19: #{tpu_custom_call.1} parent=1 // pred_check_branch
      %44 = sbr.rel (0) target = $region21
    $region20: #{tpu_custom_call.1} parent=1 // pred_region
      %46 = dma.done [#allocation7], 768
    $region21: #{tpu_custom_call.1} parent=1 // pred_fallthru
      _
    %v50 = vlaneseq
    %v51 = vand.u32 %v50, 127
    %v52 = vadd.s32 %v51, 128
    %vm53 = vcmp.lt.s32.totalorder %v51, 0
    %v54 = vsub.s32 0, %v51
    %v55 = vsel %vm53, %v54, %v51
    %v56 = vshrl.u32 %v55, 4
    %v57 = vand.u32 %v55, 15
    %v58 = vsub.s32 0, %v57
    %v59 = vsel %vm53, %v58, %v57
    %vm60 = vcmp.lt.s32.totalorder %v52, 0
    %v61 = vsub.s32 0, %v52
    %v62 = vsel %vm60, %v61, %v52
    %v63 = vshrl.u32 %v62, 4
    %v64 = vand.u32 %v62, 15
    %v65 = vsub.s32 0, %v64
    %v66 = vsel %vm60, %v65, %v64
    %vm67 = vcmp.ne.s32.totalorder %v59, 0
    %vm68 = vcmp.ne.s32.totalorder %v66, 0
    %vm69 = vcmp.lt.s32.totalorder %v59, 0
    %vm70 = vcmp.lt.s32.totalorder %v66, 0
    %vm71 = vmand %vm69, %vm67
    %vm72 = vmand %vm70, %vm68
    %v73 = vadd.s32 %v59, 16
    %v74 = vadd.s32 %v66, 16
    %v75 = vsel %vm71, %v73, %v59
    %v76 = vsel %vm72, %v74, %v66
    %vm77 = vcmp.ne.s32.totalorder %v75, 0
    %vm78 = vcmp.ne.s32.totalorder %v76, 0
    %vm79 = vcmp.ne.s32.totalorder %v75, 15
    %vm80 = vcmp.ne.s32.totalorder %v76, 15
    %v81 = vld [vmem:[#allocation3] sm:$0xff]
    %v82 = vld [vmem:[#allocation3 + $0xc] sm:$0xff]
    %v83 = vld [vmem:[#allocation3 + $0x18] sm:$0xff]
    %v84 = vld [vmem:[#allocation3 + $0x24] sm:$0xff]
    %vm85 = vmpackc.low %vm78, %vm77
    %v86 = vsel %vm85, %v81, 0
    %v87 = vsel %vm85, %v82, 0
    %v88 = vsel %vm85, %v83, 0
    %v89 = vsel %vm85, %v84, 0
    %90 = vst [vmem:[#allocation2] sm:$0xff] %v86
    %91 = vst [vmem:[#allocation2 + $0x10] sm:$0xff] %v87
    %92 = vst [vmem:[#allocation2 + $0x20] sm:$0xff] %v88
    %93 = vst [vmem:[#allocation2 + $0x30] sm:$0xff] %v89
    %s94 = scalar_lea.vmem [#allocation3], 48
    %v95 = vld [vmem:[%s94] sm:$0xff]
    %v96 = vld [vmem:[%s94 + $0xc] sm:$0xff]
    %v97 = vld [vmem:[%s94 + $0x18] sm:$0xff]
    %v98 = vld [vmem:[%s94 + $0x24] sm:$0xff]
    %v99 = vsel %vm85, %v95, 0
    %v100 = vsel %vm85, %v96, 0
    %v101 = vsel %vm85, %v97, 0
    %v102 = vsel %vm85, %v98, 0
    %103 = vst [vmem:[#allocation2 + $0x8] sm:$0xff] %v99
    %104 = vst [vmem:[#allocation2 + $0x18] sm:$0xff] %v100
    %105 = vst [vmem:[#allocation2 + $0x28] sm:$0xff] %v101
    %106 = vst [vmem:[#allocation2 + $0x38] sm:$0xff] %v102
    %v107 = vld [vmem:[#allocation3] sm:$0xff]
    %v108 = vld [vmem:[#allocation3 + $0x8] sm:$0xf]
    %v109 = vld [vmem:[#allocation3 + $0xc] sm:$0xff]
    %v110 = vld [vmem:[#allocation3 + $0x14] sm:$0xf]
    %v111 = vld [vmem:[#allocation3 + $0x18] sm:$0xff]
    %v112 = vld [vmem:[#allocation3 + $0x20] sm:$0xf]
    %v113 = vld [vmem:[#allocation3 + $0x24] sm:$0xff]
    %v114 = vld [vmem:[#allocation3 + $0x2c] sm:$0xf]
    %123 = vrot.lane.b32.xlu0 %v107, 127
    %v124 = vpop.permute.xlu0 %123
    %125 = vrot.lane.b32.xlu0 %v108, 127
    %v126 = vpop.permute.xlu0 %125
    %127 = vrot.lane.b32.xlu0 %v109, 127
    %v128 = vpop.permute.xlu0 %127
    %129 = vrot.lane.b32.xlu0 %v110, 127
    %v130 = vpop.permute.xlu0 %129
    %131 = vrot.lane.b32.xlu0 %v111, 127
    %v132 = vpop.permute.xlu0 %131
    %133 = vrot.lane.b32.xlu0 %v112, 127
    %v134 = vpop.permute.xlu0 %133
    %135 = vrot.lane.b32.xlu0 %v113, 127
    %v136 = vpop.permute.xlu0 %135
    %137 = vrot.lane.b32.xlu0 %v114, 127
    %v138 = vpop.permute.xlu0 %137
    %v139 = vrot.slane %v124, 4
    %v140 = vrot.slane %v126, 4
    %v141 = vrot.slane %v128, 4
    %v142 = vrot.slane %v130, 4
    %v143 = vrot.slane %v132, 4
    %v144 = vrot.slane %v134, 4
    %v145 = vrot.slane %v136, 4
    %v146 = vrot.slane %v138, 4
    %vm147 = vcmask 1043456
    %v148 = vsel %vm147, %v139, %v140
    %vm149 = vcmask 1039360
    %v150 = vsel %vm149, %v124, %v148
    %v151 = vsel %vm147, %v141, %v142
    %v152 = vsel %vm149, %v128, %v151
    %v153 = vsel %vm147, %v143, %v144
    %v154 = vsel %vm149, %v132, %v153
    %v155 = vsel %vm147, %v145, %v146
    %v156 = vsel %vm149, %v136, %v155
    %161 = vst [vmem:[#allocation2 + $0x40] sm:$0xff] %v150
    %162 = vst [vmem:[#allocation2 + $0x50] sm:$0xff] %v152
    %163 = vst [vmem:[#allocation2 + $0x60] sm:$0xff] %v154
    %164 = vst [vmem:[#allocation2 + $0x70] sm:$0xff] %v156
    %v165 = vld [vmem:[%s94] sm:$0xff]
    %v166 = vld [vmem:[%s94 + $0x8] sm:$0xf]
    %v167 = vld [vmem:[%s94 + $0xc] sm:$0xff]
    %v168 = vld [vmem:[%s94 + $0x14] sm:$0xf]
    %v169 = vld [vmem:[%s94 + $0x18] sm:$0xff]
    %v170 = vld [vmem:[%s94 + $0x20] sm:$0xf]
    %v171 = vld [vmem:[%s94 + $0x24] sm:$0xff]
    %v172 = vld [vmem:[%s94 + $0x2c] sm:$0xf]
    %181 = vrot.lane.b32.xlu0 %v165, 127
    %v182 = vpop.permute.xlu0 %181
    %183 = vrot.lane.b32.xlu0 %v166, 127
    %v184 = vpop.permute.xlu0 %183
    %185 = vrot.lane.b32.xlu0 %v167, 127
    %v186 = vpop.permute.xlu0 %185
    %187 = vrot.lane.b32.xlu0 %v168, 127
    %v188 = vpop.permute.xlu0 %187
    %189 = vrot.lane.b32.xlu0 %v169, 127
    %v190 = vpop.permute.xlu0 %189
    %191 = vrot.lane.b32.xlu0 %v170, 127
    %v192 = vpop.permute.xlu0 %191
    %193 = vrot.lane.b32.xlu0 %v171, 127
    %v194 = vpop.permute.xlu0 %193
    %195 = vrot.lane.b32.xlu0 %v172, 127
    %v196 = vpop.permute.xlu0 %195
    %v197 = vrot.slane %v182, 4
    %v198 = vrot.slane %v184, 4
    %v199 = vrot.slane %v186, 4
    %v200 = vrot.slane %v188, 4
    %v201 = vrot.slane %v190, 4
    %v202 = vrot.slane %v192, 4
    %v203 = vrot.slane %v194, 4
    %v204 = vrot.slane %v196, 4
    %v205 = vsel %vm147, %v197, %v198
    %v206 = vsel %vm149, %v182, %v205
    %v207 = vsel %vm147, %v199, %v200
    %v208 = vsel %vm149, %v186, %v207
    %v209 = vsel %vm147, %v201, %v202
    %v210 = vsel %vm149, %v190, %v209
    %v211 = vsel %vm147, %v203, %v204
    %v212 = vsel %vm149, %v194, %v211
    %217 = vst [vmem:[#allocation2 + $0x48] sm:$0xff] %v206
    %218 = vst [vmem:[#allocation2 + $0x58] sm:$0xff] %v208
    %219 = vst [vmem:[#allocation2 + $0x68] sm:$0xff] %v210
    %220 = vst [vmem:[#allocation2 + $0x78] sm:$0xff] %v212
    %v221 = vld [vmem:[#allocation3] sm:$0xff]
    %v222 = vld [vmem:[#allocation3 + $0x8] sm:$0xf]
    %v223 = vld [vmem:[#allocation3 + $0xc] sm:$0xff]
    %v224 = vld [vmem:[#allocation3 + $0x14] sm:$0xf]
    %v225 = vld [vmem:[#allocation3 + $0x18] sm:$0xff]
    %v226 = vld [vmem:[#allocation3 + $0x20] sm:$0xf]
    %v227 = vld [vmem:[#allocation3 + $0x24] sm:$0xff]
    %v228 = vld [vmem:[#allocation3 + $0x2c] sm:$0xf]
    %vm229 = vmpackc.low %vm80, %vm79
    %v230 = vsel %vm229, 65537, 0
    %231 = vrot.lane.b32.xlu0 %v230, 2
    %v232 = vpop.permute.xlu0 %231
    %v233 = vrot.slane %v232, 4
    %vm234 = vcmask 15360
    %v235 = vsel %vm234, %v233, %v232
    %v236 = vunpack.c.l.b16 %v235
    %v237 = vunpack.c.h.b16 %v235
    %v238 = vunpack.c.l.b16 0
    %v239 = vunpack.c.h.b16 0
    %vm240 = vcmp.ne.s32.totalorder %v236, %v238
    %vm241 = vcmp.ne.s32.totalorder %v237, %v239
    %vm242 = vmpackc.low %vm241, %vm240
    %v243 = vunpack.c.l.b16 %v233
    %v244 = vunpack.c.h.b16 %v233
    %v245 = vunpack.c.l.b16 0
    %v246 = vunpack.c.h.b16 0
    %vm247 = vcmp.ne.s32.totalorder %v243, %v245
    %vm248 = vcmp.ne.s32.totalorder %v244, %v246
    %vm249 = vmpackc.low %vm248, %vm247
    %v250 = vsel %vm242, %v221, 0
    %v251 = vsel %vm249, %v222, 0
    %v252 = vsel %vm242, %v223, 0
    %v253 = vsel %vm249, %v224, 0
    %v254 = vsel %vm242, %v225, 0
    %v255 = vsel %vm249, %v226, 0
    %v256 = vsel %vm242, %v227, 0
    %v257 = vsel %vm249, %v228, 0
    %266 = vrot.lane.b32.xlu0 %v250, 126
    %v267 = vpop.permute.xlu0 %266
    %268 = vrot.lane.b32.xlu0 %v251, 126
    %v269 = vpop.permute.xlu0 %268
    %270 = vrot.lane.b32.xlu0 %v252, 126
    %v271 = vpop.permute.xlu0 %270
    %272 = vrot.lane.b32.xlu0 %v253, 126
    %v273 = vpop.permute.xlu0 %272
    %274 = vrot.lane.b32.xlu0 %v254, 126
    %v275 = vpop.permute.xlu0 %274
    %276 = vrot.lane.b32.xlu0 %v255, 126
    %v277 = vpop.permute.xlu0 %276
    %278 = vrot.lane.b32.xlu0 %v256, 126
    %v279 = vpop.permute.xlu0 %278
    %280 = vrot.lane.b32.xlu0 %v257, 126
    %v281 = vpop.permute.xlu0 %280
    %v282 = vrot.slane %v267, 4
    %v283 = vrot.slane %v269, 4
    %v284 = vrot.slane %v271, 4
    %v285 = vrot.slane %v273, 4
    %v286 = vrot.slane %v275, 4
    %v287 = vrot.slane %v277, 4
    %v288 = vrot.slane %v279, 4
    %v289 = vrot.slane %v281, 4
    %v290 = vsel %vm147, %v282, %v283
    %vm291 = vcmask 1031168
    %v292 = vsel %vm291, %v267, %v290
    %v293 = vsel %vm147, %v284, %v285
    %v294 = vsel %vm291, %v271, %v293
    %v295 = vsel %vm147, %v286, %v287
    %v296 = vsel %vm291, %v275, %v295
    %v297 = vsel %vm147, %v288, %v289
    %v298 = vsel %vm291, %v279, %v297
    %303 = vst [vmem:[#allocation2 + $0x80] sm:$0xff] %v292
    %304 = vst [vmem:[#allocation2 + $0x90] sm:$0xff] %v294
    %305 = vst [vmem:[#allocation2 + $0xa0] sm:$0xff] %v296
    %306 = vst [vmem:[#allocation2 + $0xb0] sm:$0xff] %v298
    %v307 = vld [vmem:[%s94] sm:$0xff]
    %v308 = vld [vmem:[%s94 + $0x8] sm:$0xf]
    %v309 = vld [vmem:[%s94 + $0xc] sm:$0xff]
    %v310 = vld [vmem:[%s94 + $0x14] sm:$0xf]
    %v311 = vld [vmem:[%s94 + $0x18] sm:$0xff]
    %v312 = vld [vmem:[%s94 + $0x20] sm:$0xf]
    %v313 = vld [vmem:[%s94 + $0x24] sm:$0xff]
    %v314 = vld [vmem:[%s94 + $0x2c] sm:$0xf]
    %v315 = vsel %vm242, %v307, 0
    %v316 = vsel %vm249, %v308, 0
    %v317 = vsel %vm242, %v309, 0
    %v318 = vsel %vm249, %v310, 0
    %v319 = vsel %vm242, %v311, 0
    %v320 = vsel %vm249, %v312, 0
    %v321 = vsel %vm242, %v313, 0
    %v322 = vsel %vm249, %v314, 0
    %331 = vrot.lane.b32.xlu0 %v315, 126
    %v332 = vpop.permute.xlu0 %331
    %333 = vrot.lane.b32.xlu0 %v316, 126
    %v334 = vpop.permute.xlu0 %333
    %335 = vrot.lane.b32.xlu0 %v317, 126
    %v336 = vpop.permute.xlu0 %335
    %337 = vrot.lane.b32.xlu0 %v318, 126
    %v338 = vpop.permute.xlu0 %337
    %339 = vrot.lane.b32.xlu0 %v319, 126
    %v340 = vpop.permute.xlu0 %339
    %341 = vrot.lane.b32.xlu0 %v320, 126
    %v342 = vpop.permute.xlu0 %341
    %343 = vrot.lane.b32.xlu0 %v321, 126
    %v344 = vpop.permute.xlu0 %343
    %345 = vrot.lane.b32.xlu0 %v322, 126
    %v346 = vpop.permute.xlu0 %345
    %v347 = vrot.slane %v332, 4
    %v348 = vrot.slane %v334, 4
    %v349 = vrot.slane %v336, 4
    %v350 = vrot.slane %v338, 4
    %v351 = vrot.slane %v340, 4
    %v352 = vrot.slane %v342, 4
    %v353 = vrot.slane %v344, 4
    %v354 = vrot.slane %v346, 4
    %v355 = vsel %vm147, %v347, %v348
    %v356 = vsel %vm291, %v332, %v355
    %v357 = vsel %vm147, %v349, %v350
    %v358 = vsel %vm291, %v336, %v357
    %v359 = vsel %vm147, %v351, %v352
    %v360 = vsel %vm291, %v340, %v359
    %v361 = vsel %vm147, %v353, %v354
    %v362 = vsel %vm291, %v344, %v361
    %367 = vst [vmem:[#allocation2 + $0x88] sm:$0xff] %v356
    %368 = vst [vmem:[#allocation2 + $0x98] sm:$0xff] %v358
    %369 = vst [vmem:[#allocation2 + $0xa8] sm:$0xff] %v360
    %370 = vst [vmem:[#allocation2 + $0xb8] sm:$0xff] %v362
    %v371 = vld [vmem:[#allocation6] sm:$0xf]
    %v372 = vld [vmem:[#allocation6 + $0x4] sm:$0xf]
    %v373 = vld [vmem:[#allocation6 + $0x8] sm:$0xf]
    %v374 = vld [vmem:[#allocation6 + $0xc] sm:$0xf]
    %v375 = vld [vmem:[#allocation2] sm:$0xff]
    %v376 = vld [vmem:[#allocation2 + $0x8] sm:$0xff]
    %v377 = vld [vmem:[#allocation2 + $0x10] sm:$0xff]
    %v378 = vld [vmem:[#allocation2 + $0x18] sm:$0xff]
    %v379 = vld [vmem:[#allocation2 + $0x20] sm:$0xff]
    %v380 = vld [vmem:[#allocation2 + $0x28] sm:$0xff]
    %v381 = vld [vmem:[#allocation2 + $0x30] sm:$0xff]
    %v382 = vld [vmem:[#allocation2 + $0x38] sm:$0xff]
    %v383 = vld [vmem:[#allocation2 + $0x40] sm:$0xff]
    %v384 = vld [vmem:[#allocation2 + $0x48] sm:$0xff]
    %v385 = vld [vmem:[#allocation2 + $0x50] sm:$0xff]
    %v386 = vld [vmem:[#allocation2 + $0x58] sm:$0xff]
    %v387 = vld [vmem:[#allocation2 + $0x60] sm:$0xff]
    %v388 = vld [vmem:[#allocation2 + $0x68] sm:$0xff]
    %v389 = vld [vmem:[#allocation2 + $0x70] sm:$0xff]
    %v390 = vld [vmem:[#allocation2 + $0x78] sm:$0xff]
    %v391 = vld [vmem:[#allocation2 + $0x80] sm:$0xff]
    %v392 = vld [vmem:[#allocation2 + $0x88] sm:$0xff]
    %v393 = vld [vmem:[#allocation2 + $0x90] sm:$0xff]
    %v394 = vld [vmem:[#allocation2 + $0x98] sm:$0xff]
    %v395 = vld [vmem:[#allocation2 + $0xa0] sm:$0xff]
    %v396 = vld [vmem:[#allocation2 + $0xa8] sm:$0xff]
    %v397 = vld [vmem:[#allocation2 + $0xb0] sm:$0xff]
    %v398 = vld [vmem:[#allocation2 + $0xb8] sm:$0xff]
    %v399 = vld [vmem:[#allocation3] sm:$0xff]
    %v400 = vld [vmem:[#allocation3 + $0x8] sm:$0xf]
    %v401 = vld [vmem:[#allocation3 + $0xc] sm:$0xff]
    %v402 = vld [vmem:[#allocation3 + $0x14] sm:$0xf]
    %v403 = vld [vmem:[#allocation3 + $0x18] sm:$0xff]
    %v404 = vld [vmem:[#allocation3 + $0x20] sm:$0xf]
    %v405 = vld [vmem:[#allocation3 + $0x24] sm:$0xff]
    %v406 = vld [vmem:[#allocation3 + $0x2c] sm:$0xf]
    %v407 = vsel %vm85, 65537, 0
    %408 = vrot.lane.b32.xlu0 %v407, 16
    %v409 = vpop.permute.xlu0 %408
    %v410 = vrot.slane %v409, 4
    %vm411 = vcmask 130048
    %v412 = vsel %vm411, %v410, %v409
    %v413 = vunpack.c.l.b16 %v412
    %v414 = vunpack.c.h.b16 %v412
    %v415 = vunpack.c.l.b16 0
    %v416 = vunpack.c.h.b16 0
    %vm417 = vcmp.ne.s32.totalorder %v413, %v415
    %vm418 = vcmp.ne.s32.totalorder %v414, %v416
    %vm419 = vmpackc.low %vm418, %vm417
    %v420 = vunpack.c.l.b16 %v410
    %v421 = vunpack.c.h.b16 %v410
    %v422 = vunpack.c.l.b16 0
    %v423 = vunpack.c.h.b16 0
    %vm424 = vcmp.ne.s32.totalorder %v420, %v422
    %vm425 = vcmp.ne.s32.totalorder %v421, %v423
    %vm426 = vmpackc.low %vm425, %vm424
    %v427 = vsel %vm419, %v399, 0
    %v428 = vsel %vm426, %v400, 0
    %v429 = vsel %vm419, %v401, 0
    %v430 = vsel %vm426, %v402, 0
    %v431 = vsel %vm419, %v403, 0
    %v432 = vsel %vm426, %v404, 0
    %v433 = vsel %vm419, %v405, 0
    %v434 = vsel %vm426, %v406, 0
    %443 = vrot.lane.b32.xlu0 %v427, 112
    %v444 = vpop.permute.xlu0 %443
    %445 = vrot.lane.b32.xlu0 %v428, 112
    %v446 = vpop.permute.xlu0 %445
    %447 = vrot.lane.b32.xlu0 %v429, 112
    %v448 = vpop.permute.xlu0 %447
    %449 = vrot.lane.b32.xlu0 %v430, 112
    %v450 = vpop.permute.xlu0 %449
    %451 = vrot.lane.b32.xlu0 %v431, 112
    %v452 = vpop.permute.xlu0 %451
    %453 = vrot.lane.b32.xlu0 %v432, 112
    %v454 = vpop.permute.xlu0 %453
    %455 = vrot.lane.b32.xlu0 %v433, 112
    %v456 = vpop.permute.xlu0 %455
    %457 = vrot.lane.b32.xlu0 %v434, 112
    %v458 = vpop.permute.xlu0 %457
    %v459 = vrot.slane %v444, 4
    %v460 = vrot.slane %v446, 4
    %v461 = vrot.slane %v448, 4
    %v462 = vrot.slane %v450, 4
    %v463 = vrot.slane %v452, 4
    %v464 = vrot.slane %v454, 4
    %v465 = vrot.slane %v456, 4
    %v466 = vrot.slane %v458, 4
    %v467 = vsel %vm147, %v459, %v460
    %vm468 = vcmask 916480
    %v469 = vsel %vm468, %v444, %v467
    %v470 = vsel %vm147, %v461, %v462
    %v471 = vsel %vm468, %v448, %v470
    %v472 = vsel %vm147, %v463, %v464
    %v473 = vsel %vm468, %v452, %v472
    %v474 = vsel %vm147, %v465, %v466
    %v475 = vsel %vm468, %v456, %v474
    %s480 = scalar_lea.vmem [#allocation2], 192
    %481 = vst [vmem:[%s480] sm:$0xff] %v469
    %482 = vst [vmem:[%s480 + $0x10] sm:$0xff] %v471
    %483 = vst [vmem:[%s480 + $0x20] sm:$0xff] %v473
    %484 = vst [vmem:[%s480 + $0x30] sm:$0xff] %v475
    %v485 = vld [vmem:[%s94] sm:$0xff]
    %v486 = vld [vmem:[%s94 + $0x8] sm:$0xf]
    %v487 = vld [vmem:[%s94 + $0xc] sm:$0xff]
    %v488 = vld [vmem:[%s94 + $0x14] sm:$0xf]
    %v489 = vld [vmem:[%s94 + $0x18] sm:$0xff]
    %v490 = vld [vmem:[%s94 + $0x20] sm:$0xf]
    %v491 = vld [vmem:[%s94 + $0x24] sm:$0xff]
    %v492 = vld [vmem:[%s94 + $0x2c] sm:$0xf]
    %v493 = vsel %vm419, %v485, 0
    %v494 = vsel %vm426, %v486, 0
    %v495 = vsel %vm419, %v487, 0
    %v496 = vsel %vm426, %v488, 0
    %v497 = vsel %vm419, %v489, 0
    %v498 = vsel %vm426, %v490, 0
    %v499 = vsel %vm419, %v491, 0
    %v500 = vsel %vm426, %v492, 0
    %509 = vrot.lane.b32.xlu0 %v493, 112
    %v510 = vpop.permute.xlu0 %509
    %511 = vrot.lane.b32.xlu0 %v494, 112
    %v512 = vpop.permute.xlu0 %511
    %513 = vrot.lane.b32.xlu0 %v495, 112
    %v514 = vpop.permute.xlu0 %513
    %515 = vrot.lane.b32.xlu0 %v496, 112
    %v516 = vpop.permute.xlu0 %515
    %517 = vrot.lane.b32.xlu0 %v497, 112
    %v518 = vpop.permute.xlu0 %517
    %519 = vrot.lane.b32.xlu0 %v498, 112
    %v520 = vpop.permute.xlu0 %519
    %521 = vrot.lane.b32.xlu0 %v499, 112
    %v522 = vpop.permute.xlu0 %521
    %523 = vrot.lane.b32.xlu0 %v500, 112
    %v524 = vpop.permute.xlu0 %523
    %v525 = vrot.slane %v510, 4
    %v526 = vrot.slane %v512, 4
    %v527 = vrot.slane %v514, 4
    %v528 = vrot.slane %v516, 4
    %v529 = vrot.slane %v518, 4
    %v530 = vrot.slane %v520, 4
    %v531 = vrot.slane %v522, 4
    %v532 = vrot.slane %v524, 4
    %v533 = vsel %vm147, %v525, %v526
    %v534 = vsel %vm468, %v510, %v533
    %v535 = vsel %vm147, %v527, %v528
    %v536 = vsel %vm468, %v514, %v535
    %v537 = vsel %vm147, %v529, %v530
    %v538 = vsel %vm468, %v518, %v537
    %v539 = vsel %vm147, %v531, %v532
    %v540 = vsel %vm468, %v522, %v539
    %545 = vst [vmem:[%s480 + $0x8] sm:$0xff] %v534
    %546 = vst [vmem:[%s480 + $0x18] sm:$0xff] %v536
    %547 = vst [vmem:[%s480 + $0x28] sm:$0xff] %v538
    %548 = vst [vmem:[%s480 + $0x38] sm:$0xff] %v540
    %v549 = vld [vmem:[#allocation3] sm:$0xff]
    %v550 = vld [vmem:[#allocation3 + $0x8] sm:$0xf]
    %v551 = vld [vmem:[#allocation3 + $0xc] sm:$0xff]
    %v552 = vld [vmem:[#allocation3 + $0x14] sm:$0xf]
    %v553 = vld [vmem:[#allocation3 + $0x18] sm:$0xff]
    %v554 = vld [vmem:[#allocation3 + $0x20] sm:$0xf]
    %v555 = vld [vmem:[#allocation3 + $0x24] sm:$0xff]
    %v556 = vld [vmem:[#allocation3 + $0x2c] sm:$0xf]
    %565 = vrot.lane.b32.xlu0 %v549, 111
    %v566 = vpop.permute.xlu0 %565
    %567 = vrot.lane.b32.xlu0 %v550, 111
    %v568 = vpop.permute.xlu0 %567
    %569 = vrot.lane.b32.xlu0 %v551, 111
    %v570 = vpop.permute.xlu0 %569
    %571 = vrot.lane.b32.xlu0 %v552, 111
    %v572 = vpop.permute.xlu0 %571
    %573 = vrot.lane.b32.xlu0 %v553, 111
    %v574 = vpop.permute.xlu0 %573
    %575 = vrot.lane.b32.xlu0 %v554, 111
    %v576 = vpop.permute.xlu0 %575
    %577 = vrot.lane.b32.xlu0 %v555, 111
    %v578 = vpop.permute.xlu0 %577
    %579 = vrot.lane.b32.xlu0 %v556, 111
    %v580 = vpop.permute.xlu0 %579
    %v581 = vrot.slane %v566, 4
    %v582 = vrot.slane %v568, 4
    %v583 = vrot.slane %v570, 4
    %v584 = vrot.slane %v572, 4
    %v585 = vrot.slane %v574, 4
    %v586 = vrot.slane %v576, 4
    %v587 = vrot.slane %v578, 4
    %v588 = vrot.slane %v580, 4
    %v589 = vsel %vm147, %v581, %v582
    %vm590 = vcmask 908288
    %v591 = vsel %vm590, %v566, %v589
    %v592 = vsel %vm147, %v583, %v584
    %v593 = vsel %vm590, %v570, %v592
    %v594 = vsel %vm147, %v585, %v586
    %v595 = vsel %vm590, %v574, %v594
    %v596 = vsel %vm147, %v587, %v588
    %v597 = vsel %vm590, %v578, %v596
    %602 = vst [vmem:[%s480 + $0x40] sm:$0xff] %v591
    %603 = vst [vmem:[%s480 + $0x50] sm:$0xff] %v593
    %604 = vst [vmem:[%s480 + $0x60] sm:$0xff] %v595
    %605 = vst [vmem:[%s480 + $0x70] sm:$0xff] %v597
    %v606 = vld [vmem:[%s94] sm:$0xff]
    %v607 = vld [vmem:[%s94 + $0x8] sm:$0xf]
    %v608 = vld [vmem:[%s94 + $0xc] sm:$0xff]
    %v609 = vld [vmem:[%s94 + $0x14] sm:$0xf]
    %v610 = vld [vmem:[%s94 + $0x18] sm:$0xff]
    %v611 = vld [vmem:[%s94 + $0x20] sm:$0xf]
    %v612 = vld [vmem:[%s94 + $0x24] sm:$0xff]
    %v613 = vld [vmem:[%s94 + $0x2c] sm:$0xf]
    %622 = vrot.lane.b32.xlu0 %v606, 111
    %v623 = vpop.permute.xlu0 %622
    %624 = vrot.lane.b32.xlu0 %v607, 111
    %v625 = vpop.permute.xlu0 %624
    %626 = vrot.lane.b32.xlu0 %v608, 111
    %v627 = vpop.permute.xlu0 %626
    %628 = vrot.lane.b32.xlu0 %v609, 111
    %v629 = vpop.permute.xlu0 %628
    %630 = vrot.lane.b32.xlu0 %v610, 111
    %v631 = vpop.permute.xlu0 %630
    %632 = vrot.lane.b32.xlu0 %v611, 111
    %v633 = vpop.permute.xlu0 %632
    %634 = vrot.lane.b32.xlu0 %v612, 111
    %v635 = vpop.permute.xlu0 %634
    %636 = vrot.lane.b32.xlu0 %v613, 111
    %v637 = vpop.permute.xlu0 %636
    %v638 = vrot.slane %v623, 4
    %v639 = vrot.slane %v625, 4
    %v640 = vrot.slane %v627, 4
    %v641 = vrot.slane %v629, 4
    %v642 = vrot.slane %v631, 4
    %v643 = vrot.slane %v633, 4
    %v644 = vrot.slane %v635, 4
    %v645 = vrot.slane %v637, 4
    %v646 = vsel %vm147, %v638, %v639
    %v647 = vsel %vm590, %v623, %v646
    %v648 = vsel %vm147, %v640, %v641
    %v649 = vsel %vm590, %v627, %v648
    %v650 = vsel %vm147, %v642, %v643
    %v651 = vsel %vm590, %v631, %v650
    %v652 = vsel %vm147, %v644, %v645
    %v653 = vsel %vm590, %v635, %v652
    %658 = vst [vmem:[%s480 + $0x48] sm:$0xff] %v647
    %659 = vst [vmem:[%s480 + $0x58] sm:$0xff] %v649
    %660 = vst [vmem:[%s480 + $0x68] sm:$0xff] %v651
    %661 = vst [vmem:[%s480 + $0x78] sm:$0xff] %v653
    %v662 = vld [vmem:[#allocation3] sm:$0xff]
    %v663 = vld [vmem:[#allocation3 + $0x8] sm:$0xf]
    %v664 = vld [vmem:[#allocation3 + $0xc] sm:$0xff]
    %v665 = vld [vmem:[#allocation3 + $0x14] sm:$0xf]
    %v666 = vld [vmem:[#allocation3 + $0x18] sm:$0xff]
    %v667 = vld [vmem:[#allocation3 + $0x20] sm:$0xf]
    %v668 = vld [vmem:[#allocation3 + $0x24] sm:$0xff]
    %v669 = vld [vmem:[#allocation3 + $0x2c] sm:$0xf]
    %670 = vrot.lane.b32.xlu0 %v230, 18
    %v671 = vpop.permute.xlu0 %670
    %v672 = vrot.slane %v671, 4
    %vm673 = vcmask 146432
    %v674 = vsel %vm673, %v672, %v671
    %v675 = vunpack.c.l.b16 %v674
    %v676 = vunpack.c.h.b16 %v674
    %v677 = vunpack.c.l.b16 0
    %v678 = vunpack.c.h.b16 0
    %vm679 = vcmp.ne.s32.totalorder %v675, %v677
    %vm680 = vcmp.ne.s32.totalorder %v676, %v678
    %vm681 = vmpackc.low %vm680, %vm679
    %v682 = vunpack.c.l.b16 %v672
    %v683 = vunpack.c.h.b16 %v672
    %v684 = vunpack.c.l.b16 0
    %v685 = vunpack.c.h.b16 0
    %vm686 = vcmp.ne.s32.totalorder %v682, %v684
    %vm687 = vcmp.ne.s32.totalorder %v683, %v685
    %vm688 = vmpackc.low %vm687, %vm686
    %v689 = vsel %vm681, %v662, 0
    %v690 = vsel %vm688, %v663, 0
    %v691 = vsel %vm681, %v664, 0
    %v692 = vsel %vm688, %v665, 0
    %v693 = vsel %vm681, %v666, 0
    %v694 = vsel %vm688, %v667, 0
    %v695 = vsel %vm681, %v668, 0
    %v696 = vsel %vm688, %v669, 0
    %705 = vrot.lane.b32.xlu0 %v689, 110
    %v706 = vpop.permute.xlu0 %705
    %707 = vrot.lane.b32.xlu0 %v690, 110
    %v708 = vpop.permute.xlu0 %707
    %709 = vrot.lane.b32.xlu0 %v691, 110
    %v710 = vpop.permute.xlu0 %709
    %711 = vrot.lane.b32.xlu0 %v692, 110
    %v712 = vpop.permute.xlu0 %711
    %713 = vrot.lane.b32.xlu0 %v693, 110
    %v714 = vpop.permute.xlu0 %713
    %715 = vrot.lane.b32.xlu0 %v694, 110
    %v716 = vpop.permute.xlu0 %715
    %717 = vrot.lane.b32.xlu0 %v695, 110
    %v718 = vpop.permute.xlu0 %717
    %719 = vrot.lane.b32.xlu0 %v696, 110
    %v720 = vpop.permute.xlu0 %719
    %v721 = vrot.slane %v706, 4
    %v722 = vrot.slane %v708, 4
    %v723 = vrot.slane %v710, 4
    %v724 = vrot.slane %v712, 4
    %v725 = vrot.slane %v714, 4
    %v726 = vrot.slane %v716, 4
    %v727 = vrot.slane %v718, 4
    %v728 = vrot.slane %v720, 4
    %v729 = vsel %vm147, %v721, %v722
    %vm730 = vcmask 900096
    %v731 = vsel %vm730, %v706, %v729
    %v732 = vsel %vm147, %v723, %v724
    %v733 = vsel %vm730, %v710, %v732
    %v734 = vsel %vm147, %v725, %v726
    %v735 = vsel %vm730, %v714, %v734
    %v736 = vsel %vm147, %v727, %v728
    %v737 = vsel %vm730, %v718, %v736
    %742 = vst [vmem:[%s480 + $0x80] sm:$0xff] %v731
    %743 = vst [vmem:[%s480 + $0x90] sm:$0xff] %v733
    %744 = vst [vmem:[%s480 + $0xa0] sm:$0xff] %v735
    %745 = vst [vmem:[%s480 + $0xb0] sm:$0xff] %v737
    %v746 = vld [vmem:[%s94] sm:$0xff]
    %v747 = vld [vmem:[%s94 + $0x8] sm:$0xf]
    %v748 = vld [vmem:[%s94 + $0xc] sm:$0xff]
    %v749 = vld [vmem:[%s94 + $0x14] sm:$0xf]
    %v750 = vld [vmem:[%s94 + $0x18] sm:$0xff]
    %v751 = vld [vmem:[%s94 + $0x20] sm:$0xf]
    %v752 = vld [vmem:[%s94 + $0x24] sm:$0xff]
    %v753 = vld [vmem:[%s94 + $0x2c] sm:$0xf]
    %v754 = vsel %vm681, %v746, 0
    %v755 = vsel %vm688, %v747, 0
    %v756 = vsel %vm681, %v748, 0
    %v757 = vsel %vm688, %v749, 0
    %v758 = vsel %vm681, %v750, 0
    %v759 = vsel %vm688, %v751, 0
    %v760 = vsel %vm681, %v752, 0
    %v761 = vsel %vm688, %v753, 0
    %770 = vrot.lane.b32.xlu0 %v754, 110
    %v771 = vpop.permute.xlu0 %770
    %772 = vrot.lane.b32.xlu0 %v755, 110
    %v773 = vpop.permute.xlu0 %772
    %774 = vrot.lane.b32.xlu0 %v756, 110
    %v775 = vpop.permute.xlu0 %774
    %776 = vrot.lane.b32.xlu0 %v757, 110
    %v777 = vpop.permute.xlu0 %776
    %778 = vrot.lane.b32.xlu0 %v758, 110
    %v779 = vpop.permute.xlu0 %778
    %780 = vrot.lane.b32.xlu0 %v759, 110
    %v781 = vpop.permute.xlu0 %780
    %782 = vrot.lane.b32.xlu0 %v760, 110
    %v783 = vpop.permute.xlu0 %782
    %784 = vrot.lane.b32.xlu0 %v761, 110
    %v785 = vpop.permute.xlu0 %784
    %v786 = vrot.slane %v771, 4
    %v787 = vrot.slane %v773, 4
    %v788 = vrot.slane %v775, 4
    %v789 = vrot.slane %v777, 4
    %v790 = vrot.slane %v779, 4
    %v791 = vrot.slane %v781, 4
    %v792 = vrot.slane %v783, 4
    %v793 = vrot.slane %v785, 4
    %v794 = vsel %vm147, %v786, %v787
    %v795 = vsel %vm730, %v771, %v794
    %v796 = vsel %vm147, %v788, %v789
    %v797 = vsel %vm730, %v775, %v796
    %v798 = vsel %vm147, %v790, %v791
    %v799 = vsel %vm730, %v779, %v798
    %v800 = vsel %vm147, %v792, %v793
    %v801 = vsel %vm730, %v783, %v800
    %806 = vst [vmem:[%s480 + $0x88] sm:$0xff] %v795
    %807 = vst [vmem:[%s480 + $0x98] sm:$0xff] %v797
    %808 = vst [vmem:[%s480 + $0xa8] sm:$0xff] %v799
    %809 = vst [vmem:[%s480 + $0xb8] sm:$0xff] %v801
    %s810 = scalar_lea.vmem [#allocation6], 16
    %v811 = vld [vmem:[%s810] sm:$0xf]
    %v812 = vld [vmem:[%s810 + $0x4] sm:$0xf]
    %v813 = vld [vmem:[%s810 + $0x8] sm:$0xf]
    %v814 = vld [vmem:[%s810 + $0xc] sm:$0xf]
    %v815 = vld [vmem:[%s480] sm:$0xff]
    %v816 = vld [vmem:[%s480 + $0x8] sm:$0xff]
    %v817 = vld [vmem:[%s480 + $0x10] sm:$0xff]
    %v818 = vld [vmem:[%s480 + $0x18] sm:$0xff]
    %v819 = vld [vmem:[%s480 + $0x20] sm:$0xff]
    %v820 = vld [vmem:[%s480 + $0x28] sm:$0xff]
    %v821 = vld [vmem:[%s480 + $0x30] sm:$0xff]
    %v822 = vld [vmem:[%s480 + $0x38] sm:$0xff]
    %v823 = vld [vmem:[%s480 + $0x40] sm:$0xff]
    %v824 = vld [vmem:[%s480 + $0x48] sm:$0xff]
    %v825 = vld [vmem:[%s480 + $0x50] sm:$0xff]
    %v826 = vld [vmem:[%s480 + $0x58] sm:$0xff]
    %v827 = vld [vmem:[%s480 + $0x60] sm:$0xff]
    %v828 = vld [vmem:[%s480 + $0x68] sm:$0xff]
    %v829 = vld [vmem:[%s480 + $0x70] sm:$0xff]
    %v830 = vld [vmem:[%s480 + $0x78] sm:$0xff]
    %v831 = vld [vmem:[%s480 + $0x80] sm:$0xff]
    %v832 = vld [vmem:[%s480 + $0x88] sm:$0xff]
    %v833 = vld [vmem:[%s480 + $0x90] sm:$0xff]
    %v834 = vld [vmem:[%s480 + $0x98] sm:$0xff]
    %v835 = vld [vmem:[%s480 + $0xa0] sm:$0xff]
    %v836 = vld [vmem:[%s480 + $0xa8] sm:$0xff]
    %v837 = vld [vmem:[%s480 + $0xb0] sm:$0xff]
    %v838 = vld [vmem:[%s480 + $0xb8] sm:$0xff]
    %v843 = vunpack.c.l.b16 %v811
    %v844 = vunpack.c.l.b16 %v812
    %v845 = vunpack.c.l.b16 %v813
    %v846 = vunpack.c.l.b16 %v814
    %v847 = vpack.c.b16 %v844, %v843
    %v848 = vpack.c.b16 %v846, %v845
    %v873 = vunpack.c.l.b16 %v815
    %v874 = vunpack.c.h.b16 %v815
    %v875 = vunpack.c.l.b16 %v816
    %v876 = vunpack.c.h.b16 %v816
    %v877 = vunpack.c.l.b16 %v817
    %v878 = vunpack.c.h.b16 %v817
    %v879 = vunpack.c.l.b16 %v818
    %v880 = vunpack.c.h.b16 %v818
    %v881 = vunpack.c.l.b16 %v819
    %v882 = vunpack.c.h.b16 %v819
    %v883 = vunpack.c.l.b16 %v820
    %v884 = vunpack.c.h.b16 %v820
    %v885 = vunpack.c.l.b16 %v821
    %v886 = vunpack.c.h.b16 %v821
    %v887 = vunpack.c.l.b16 %v822
    %v888 = vunpack.c.h.b16 %v822
    %v889 = vunpack.c.l.b16 %v823
    %v890 = vunpack.c.h.b16 %v823
    %v891 = vunpack.c.l.b16 %v824
    %v892 = vunpack.c.h.b16 %v824
    %v893 = vunpack.c.l.b16 %v825
    %v894 = vunpack.c.h.b16 %v825
    %v895 = vunpack.c.l.b16 %v826
    %v896 = vunpack.c.h.b16 %v826
    %v897 = vunpack.c.l.b16 %v827
    %v898 = vunpack.c.h.b16 %v827
    %v899 = vunpack.c.l.b16 %v828
    %v900 = vunpack.c.h.b16 %v828
    %v901 = vunpack.c.l.b16 %v829
    %v902 = vunpack.c.h.b16 %v829
    %v903 = vunpack.c.l.b16 %v830
    %v904 = vunpack.c.h.b16 %v830
    %v905 = vunpack.c.l.b16 %v831
    %v906 = vunpack.c.h.b16 %v831
    %v907 = vunpack.c.l.b16 %v832
    %v908 = vunpack.c.h.b16 %v832
    %v909 = vunpack.c.l.b16 %v833
    %v910 = vunpack.c.h.b16 %v833
    %v911 = vunpack.c.l.b16 %v834
    %v912 = vunpack.c.h.b16 %v834
    %v913 = vunpack.c.l.b16 %v835
    %v914 = vunpack.c.h.b16 %v835
    %v915 = vunpack.c.l.b16 %v836
    %v916 = vunpack.c.h.b16 %v836
    %v917 = vunpack.c.l.b16 %v837
    %v918 = vunpack.c.h.b16 %v837
    %v919 = vunpack.c.l.b16 %v838
    %v920 = vunpack.c.h.b16 %v838
    %v921 = vpack.c.b16 %v877, %v873
    %v922 = vpack.c.b16 %v878, %v874
    %v923 = vpack.c.b16 %v879, %v875
    %v924 = vpack.c.b16 %v880, %v876
    %v925 = vpack.c.b16 %v885, %v881
    %v926 = vpack.c.b16 %v886, %v882
    %v927 = vpack.c.b16 %v887, %v883
    %v928 = vpack.c.b16 %v888, %v884
    %v929 = vpack.c.b16 %v893, %v889
    %v930 = vpack.c.b16 %v894, %v890
    %v931 = vpack.c.b16 %v895, %v891
    %v932 = vpack.c.b16 %v896, %v892
    %v933 = vpack.c.b16 %v901, %v897
    %v934 = vpack.c.b16 %v902, %v898
    %v935 = vpack.c.b16 %v903, %v899
    %v936 = vpack.c.b16 %v904, %v900
    %v937 = vpack.c.b16 %v909, %v905
    %v938 = vpack.c.b16 %v910, %v906
    %v939 = vpack.c.b16 %v911, %v907
    %v940 = vpack.c.b16 %v912, %v908
    %v941 = vpack.c.b16 %v917, %v913
    %v942 = vpack.c.b16 %v918, %v914
    %v943 = vpack.c.b16 %v919, %v915
    %v944 = vpack.c.b16 %v920, %v916
    %vm969 = vcmask 785408
    %v971 = vsel %vm969, %v847, 0
    %v974 = vsel %vm969, %v848, 0
    %976 = vmatpush.bf16.msra.mxu0 0
    %977 = vmatpush.bf16.msra.mxu0 0
    %978 = vmatpush.bf16.msra.mxu0 %v941
    %979 = vmatpush.bf16.msra.mxu0 %v937
    %980 = vmatpush.bf16.msra.mxu0 %v933
    %981 = vmatpush.bf16.msra.mxu0 %v929
    %982 = vmatpush.bf16.msra.mxu0 %v925
    %983 = vmatpush.bf16.msra.mxu0 %v921
    %984 = vmatmul.bf16.gmra.mxu0 %v971
    %v985 = vpop.f32.mrf.mxu0
    %v986 = vadd.f32 0.0, %v985
    %v987 = vpop.f32.mrf.mxu0
    %v988 = vadd.f32 0.0, %v987
    %989 = vmatmul.bf16.gmra.mxu0 %v974
    %v990 = vpop.f32.mrf.mxu0
    %v991 = vadd.f32 0.0, %v990
    %v992 = vpop.f32.mrf.mxu0
    %v993 = vadd.f32 0.0, %v992
    %994 = vdwg.mxu0
    %995 = vmatpush.bf16.msra.mxu0 0
    %996 = vmatpush.bf16.msra.mxu0 0
    %997 = vmatpush.bf16.msra.mxu0 %v942
    %998 = vmatpush.bf16.msra.mxu0 %v938
    %999 = vmatpush.bf16.msra.mxu0 %v934
    %1000 = vmatpush.bf16.msra.mxu0 %v930
    %1001 = vmatpush.bf16.msra.mxu0 %v926
    %1002 = vmatpush.bf16.msra.mxu0 %v922
    %1003 = vmatmul.bf16.gmra.mxu0 %v971
    %v1004 = vpop.f32.mrf.mxu0
    %v1005 = vadd.f32 0.0, %v1004
    %v1006 = vpop.f32.mrf.mxu0
    %v1007 = vadd.f32 0.0, %v1006
    %1008 = vmatmul.bf16.gmra.mxu0 %v974
    %v1009 = vpop.f32.mrf.mxu0
    %v1010 = vadd.f32 0.0, %v1009
    %v1011 = vpop.f32.mrf.mxu0
    %v1012 = vadd.f32 0.0, %v1011
    %1013 = vdwg.mxu0
    %1014 = vmatpush.bf16.msra.mxu0 0
    %1015 = vmatpush.bf16.msra.mxu0 0
    %1016 = vmatpush.bf16.msra.mxu0 %v943
    %1017 = vmatpush.bf16.msra.mxu0 %v939
    %1018 = vmatpush.bf16.msra.mxu0 %v935
    %1019 = vmatpush.bf16.msra.mxu0 %v931
    %1020 = vmatpush.bf16.msra.mxu0 %v927
    %1021 = vmatpush.bf16.msra.mxu0 %v923
    %1022 = vmatmul.bf16.gmra.mxu0 %v971
    %v1023 = vpop.f32.mrf.mxu0
    %v1024 = vadd.f32 0.0, %v1023
    %v1025 = vpop.f32.mrf.mxu0
    %v1026 = vadd.f32 0.0, %v1025
    %1027 = vmatmul.bf16.gmra.mxu0 %v974
    %v1028 = vpop.f32.mrf.mxu0
    %v1029 = vadd.f32 0.0, %v1028
    %v1030 = vpop.f32.mrf.mxu0
    %v1031 = vadd.f32 0.0, %v1030
    %1032 = vdwg.mxu0
    %1033 = vmatpush.bf16.msra.mxu0 0
    %1034 = vmatpush.bf16.msra.mxu0 0
    %1035 = vmatpush.bf16.msra.mxu0 %v944
    %1036 = vmatpush.bf16.msra.mxu0 %v940
    %1037 = vmatpush.bf16.msra.mxu0 %v936
    %1038 = vmatpush.bf16.msra.mxu0 %v932
    %1039 = vmatpush.bf16.msra.mxu0 %v928
    %1040 = vmatpush.bf16.msra.mxu0 %v924
    %1041 = vmatmul.bf16.gmra.mxu0 %v971
    %v1042 = vpop.f32.mrf.mxu0
    %v1043 = vadd.f32 0.0, %v1042
    %v1044 = vpop.f32.mrf.mxu0
    %v1045 = vadd.f32 0.0, %v1044
    %1046 = vmatmul.bf16.gmra.mxu0 %v974
    %v1047 = vpop.f32.mrf.mxu0
    %v1048 = vadd.f32 0.0, %v1047
    %v1049 = vpop.f32.mrf.mxu0
    %v1050 = vadd.f32 0.0, %v1049
    %1051 = vdwg.mxu0
    %v1056 = vunpack.c.l.b16 %v371
    %v1057 = vunpack.c.l.b16 %v372
    %v1058 = vunpack.c.l.b16 %v373
    %v1059 = vunpack.c.l.b16 %v374
    %v1060 = vpack.c.b16 %v1057, %v1056
    %v1061 = vpack.c.b16 %v1059, %v1058
    %v1086 = vunpack.c.l.b16 %v375
    %v1087 = vunpack.c.h.b16 %v375
    %v1088 = vunpack.c.l.b16 %v376
    %v1089 = vunpack.c.h.b16 %v376
    %v1090 = vunpack.c.l.b16 %v377
    %v1091 = vunpack.c.h.b16 %v377
    %v1092 = vunpack.c.l.b16 %v378
    %v1093 = vunpack.c.h.b16 %v378
    %v1094 = vunpack.c.l.b16 %v379
    %v1095 = vunpack.c.h.b16 %v379
    %v1096 = vunpack.c.l.b16 %v380
    %v1097 = vunpack.c.h.b16 %v380
    %v1098 = vunpack.c.l.b16 %v381
    %v1099 = vunpack.c.h.b16 %v381
    %v1100 = vunpack.c.l.b16 %v382
    %v1101 = vunpack.c.h.b16 %v382
    %v1102 = vunpack.c.l.b16 %v383
    %v1103 = vunpack.c.h.b16 %v383
    %v1104 = vunpack.c.l.b16 %v384
    %v1105 = vunpack.c.h.b16 %v384
    %v1106 = vunpack.c.l.b16 %v385
    %v1107 = vunpack.c.h.b16 %v385
    %v1108 = vunpack.c.l.b16 %v386
    %v1109 = vunpack.c.h.b16 %v386
    %v1110 = vunpack.c.l.b16 %v387
    %v1111 = vunpack.c.h.b16 %v387
    %v1112 = vunpack.c.l.b16 %v388
    %v1113 = vunpack.c.h.b16 %v388
    %v1114 = vunpack.c.l.b16 %v389
    %v1115 = vunpack.c.h.b16 %v389
    %v1116 = vunpack.c.l.b16 %v390
    %v1117 = vunpack.c.h.b16 %v390
    %v1118 = vunpack.c.l.b16 %v391
    %v1119 = vunpack.c.h.b16 %v391
    %v1120 = vunpack.c.l.b16 %v392
    %v1121 = vunpack.c.h.b16 %v392
    %v1122 = vunpack.c.l.b16 %v393
    %v1123 = vunpack.c.h.b16 %v393
    %v1124 = vunpack.c.l.b16 %v394
    %v1125 = vunpack.c.h.b16 %v394
    %v1126 = vunpack.c.l.b16 %v395
    %v1127 = vunpack.c.h.b16 %v395
    %v1128 = vunpack.c.l.b16 %v396
    %v1129 = vunpack.c.h.b16 %v396
    %v1130 = vunpack.c.l.b16 %v397
    %v1131 = vunpack.c.h.b16 %v397
    %v1132 = vunpack.c.l.b16 %v398
    %v1133 = vunpack.c.h.b16 %v398
    %v1134 = vpack.c.b16 %v1090, %v1086
    %v1135 = vpack.c.b16 %v1091, %v1087
    %v1136 = vpack.c.b16 %v1092, %v1088
    %v1137 = vpack.c.b16 %v1093, %v1089
    %v1138 = vpack.c.b16 %v1098, %v1094
    %v1139 = vpack.c.b16 %v1099, %v1095
    %v1140 = vpack.c.b16 %v1100, %v1096
    %v1141 = vpack.c.b16 %v1101, %v1097
    %v1142 = vpack.c.b16 %v1106, %v1102
    %v1143 = vpack.c.b16 %v1107, %v1103
    %v1144 = vpack.c.b16 %v1108, %v1104
    %v1145 = vpack.c.b16 %v1109, %v1105
    %v1146 = vpack.c.b16 %v1114, %v1110
    %v1147 = vpack.c.b16 %v1115, %v1111
    %v1148 = vpack.c.b16 %v1116, %v1112
    %v1149 = vpack.c.b16 %v1117, %v1113
    %v1150 = vpack.c.b16 %v1122, %v1118
    %v1151 = vpack.c.b16 %v1123, %v1119
    %v1152 = vpack.c.b16 %v1124, %v1120
    %v1153 = vpack.c.b16 %v1125, %v1121
    %v1154 = vpack.c.b16 %v1130, %v1126
    %v1155 = vpack.c.b16 %v1131, %v1127
    %v1156 = vpack.c.b16 %v1132, %v1128
    %v1157 = vpack.c.b16 %v1133, %v1129
    %v1183 = vsel %vm969, %v1060, 0
    %v1186 = vsel %vm969, %v1061, 0
    %1188 = vmatpush.bf16.msra.mxu0 0
    %1189 = vmatpush.bf16.msra.mxu0 0
    %1190 = vmatpush.bf16.msra.mxu0 %v1154
    %1191 = vmatpush.bf16.msra.mxu0 %v1150
    %1192 = vmatpush.bf16.msra.mxu0 %v1146
    %1193 = vmatpush.bf16.msra.mxu0 %v1142
    %1194 = vmatpush.bf16.msra.mxu0 %v1138
    %1195 = vmatpush.bf16.msra.mxu0 %v1134
    %1196 = vmatmul.bf16.gmra.mxu0 %v1183
    %v1197 = vpop.f32.mrf.mxu0
    %v1198 = vadd.f32 %v986, %v1197
    %v1199 = vpop.f32.mrf.mxu0
    %v1200 = vadd.f32 %v988, %v1199
    %1201 = vmatmul.bf16.gmra.mxu0 %v1186
    %v1202 = vpop.f32.mrf.mxu0
    %v1203 = vadd.f32 %v991, %v1202
    %v1204 = vpop.f32.mrf.mxu0
    %v1205 = vadd.f32 %v993, %v1204
    %1206 = vdwg.mxu0
    %1207 = vmatpush.bf16.msra.mxu0 0
    %1208 = vmatpush.bf16.msra.mxu0 0
    %1209 = vmatpush.bf16.msra.mxu0 %v1155
    %1210 = vmatpush.bf16.msra.mxu0 %v1151
    %1211 = vmatpush.bf16.msra.mxu0 %v1147
    %1212 = vmatpush.bf16.msra.mxu0 %v1143
    %1213 = vmatpush.bf16.msra.mxu0 %v1139
    %1214 = vmatpush.bf16.msra.mxu0 %v1135
    %1215 = vmatmul.bf16.gmra.mxu0 %v1183
    %v1216 = vpop.f32.mrf.mxu0
    %v1217 = vadd.f32 %v1005, %v1216
    %v1218 = vpop.f32.mrf.mxu0
    %v1219 = vadd.f32 %v1007, %v1218
    %1220 = vmatmul.bf16.gmra.mxu0 %v1186
    %v1221 = vpop.f32.mrf.mxu0
    %v1222 = vadd.f32 %v1010, %v1221
    %v1223 = vpop.f32.mrf.mxu0
    %v1224 = vadd.f32 %v1012, %v1223
    %1225 = vdwg.mxu0
    %1226 = vmatpush.bf16.msra.mxu0 0
    %1227 = vmatpush.bf16.msra.mxu0 0
    %1228 = vmatpush.bf16.msra.mxu0 %v1156
    %1229 = vmatpush.bf16.msra.mxu0 %v1152
    %1230 = vmatpush.bf16.msra.mxu0 %v1148
    %1231 = vmatpush.bf16.msra.mxu0 %v1144
    %1232 = vmatpush.bf16.msra.mxu0 %v1140
    %1233 = vmatpush.bf16.msra.mxu0 %v1136
    %1234 = vmatmul.bf16.gmra.mxu0 %v1183
    %v1235 = vpop.f32.mrf.mxu0
    %v1236 = vadd.f32 %v1024, %v1235
    %v1237 = vpop.f32.mrf.mxu0
    %v1238 = vadd.f32 %v1026, %v1237
    %1239 = vmatmul.bf16.gmra.mxu0 %v1186
    %v1240 = vpop.f32.mrf.mxu0
    %v1241 = vadd.f32 %v1029, %v1240
    %v1242 = vpop.f32.mrf.mxu0
    %v1243 = vadd.f32 %v1031, %v1242
    %1244 = vdwg.mxu0
    %1245 = vmatpush.bf16.msra.mxu0 0
    %1246 = vmatpush.bf16.msra.mxu0 0
    %1247 = vmatpush.bf16.msra.mxu0 %v1157
    %1248 = vmatpush.bf16.msra.mxu0 %v1153
    %1249 = vmatpush.bf16.msra.mxu0 %v1149
    %1250 = vmatpush.bf16.msra.mxu0 %v1145
    %1251 = vmatpush.bf16.msra.mxu0 %v1141
    %1252 = vmatpush.bf16.msra.mxu0 %v1137
    %1253 = vmatmul.bf16.gmra.mxu0 %v1183
    %v1254 = vpop.f32.mrf.mxu0
    %v1255 = vadd.f32 %v1043, %v1254
    %v1256 = vpop.f32.mrf.mxu0
    %v1257 = vadd.f32 %v1045, %v1256
    %1258 = vmatmul.bf16.gmra.mxu0 %v1186
    %v1259 = vpop.f32.mrf.mxu0
    %v1260 = vadd.f32 %v1048, %v1259
    %v1261 = vpop.f32.mrf.mxu0
    %v1262 = vadd.f32 %v1050, %v1261
    %1263 = vdwg.mxu0
    %v1264 = vld [vmem:[#allocation3] sm:$0xff]
    %v1265 = vld [vmem:[#allocation3 + $0x8] sm:$0xf]
    %v1266 = vld [vmem:[#allocation3 + $0xc] sm:$0xff]
    %v1267 = vld [vmem:[#allocation3 + $0x14] sm:$0xf]
    %v1268 = vld [vmem:[#allocation3 + $0x18] sm:$0xff]
    %v1269 = vld [vmem:[#allocation3 + $0x20] sm:$0xf]
    %v1270 = vld [vmem:[#allocation3 + $0x24] sm:$0xff]
    %v1271 = vld [vmem:[#allocation3 + $0x2c] sm:$0xf]
    %1272 = vrot.lane.b32.xlu0 %v407, 32
    %v1273 = vpop.permute.xlu0 %1272
    %v1274 = vrot.slane %v1273, 4
    %vm1275 = vcmask 261120
    %v1276 = vsel %vm1275, %v1274, %v1273
    %v1277 = vunpack.c.l.b16 %v1276
    %v1278 = vunpack.c.h.b16 %v1276
    %v1279 = vunpack.c.l.b16 0
    %v1280 = vunpack.c.h.b16 0
    %vm1281 = vcmp.ne.s32.totalorder %v1277, %v1279
    %vm1282 = vcmp.ne.s32.totalorder %v1278, %v1280
    %vm1283 = vmpackc.low %vm1282, %vm1281
    %v1284 = vunpack.c.l.b16 %v1274
    %v1285 = vunpack.c.h.b16 %v1274
    %v1286 = vunpack.c.l.b16 0
    %v1287 = vunpack.c.h.b16 0
    %vm1288 = vcmp.ne.s32.totalorder %v1284, %v1286
    %vm1289 = vcmp.ne.s32.totalorder %v1285, %v1287
    %vm1290 = vmpackc.low %vm1289, %vm1288
    %v1291 = vsel %vm1283, %v1264, 0
    %v1292 = vsel %vm1290, %v1265, 0
    %v1293 = vsel %vm1283, %v1266, 0
    %v1294 = vsel %vm1290, %v1267, 0
    %v1295 = vsel %vm1283, %v1268, 0
    %v1296 = vsel %vm1290, %v1269, 0
    %v1297 = vsel %vm1283, %v1270, 0
    %v1298 = vsel %vm1290, %v1271, 0
    %1307 = vrot.lane.b32.xlu0 %v1291, 96
    %v1308 = vpop.permute.xlu0 %1307
    %1309 = vrot.lane.b32.xlu0 %v1292, 96
    %v1310 = vpop.permute.xlu0 %1309
    %1311 = vrot.lane.b32.xlu0 %v1293, 96
    %v1312 = vpop.permute.xlu0 %1311
    %1313 = vrot.lane.b32.xlu0 %v1294, 96
    %v1314 = vpop.permute.xlu0 %1313
    %1315 = vrot.lane.b32.xlu0 %v1295, 96
    %v1316 = vpop.permute.xlu0 %1315
    %1317 = vrot.lane.b32.xlu0 %v1296, 96
    %v1318 = vpop.permute.xlu0 %1317
    %1319 = vrot.lane.b32.xlu0 %v1297, 96
    %v1320 = vpop.permute.xlu0 %1319
    %1321 = vrot.lane.b32.xlu0 %v1298, 96
    %v1322 = vpop.permute.xlu0 %1321
    %v1323 = vrot.slane %v1308, 4
    %v1324 = vrot.slane %v1310, 4
    %v1325 = vrot.slane %v1312, 4
    %v1326 = vrot.slane %v1314, 4
    %v1327 = vrot.slane %v1316, 4
    %v1328 = vrot.slane %v1318, 4
    %v1329 = vrot.slane %v1320, 4
    %v1330 = vrot.slane %v1322, 4
    %v1331 = vsel %vm147, %v1323, %v1324
    %vm1332 = vcmask 785408
    %v1333 = vsel %vm1332, %v1308, %v1331
    %v1334 = vsel %vm147, %v1325, %v1326
    %v1335 = vsel %vm1332, %v1312, %v1334
    %v1336 = vsel %vm147, %v1327, %v1328
    %v1337 = vsel %vm1332, %v1316, %v1336
    %v1338 = vsel %vm147, %v1329, %v1330
    %v1339 = vsel %vm1332, %v1320, %v1338
    %s1344 = scalar_lea.vmem [#allocation2], 384
    %1345 = vst [vmem:[%s1344] sm:$0xff] %v1333
    %1346 = vst [vmem:[%s1344 + $0x10] sm:$0xff] %v1335
    %1347 = vst [vmem:[%s1344 + $0x20] sm:$0xff] %v1337
    %1348 = vst [vmem:[%s1344 + $0x30] sm:$0xff] %v1339
    %v1349 = vld [vmem:[%s94] sm:$0xff]
    %v1350 = vld [vmem:[%s94 + $0x8] sm:$0xf]
    %v1351 = vld [vmem:[%s94 + $0xc] sm:$0xff]
    %v1352 = vld [vmem:[%s94 + $0x14] sm:$0xf]
    %v1353 = vld [vmem:[%s94 + $0x18] sm:$0xff]
    %v1354 = vld [vmem:[%s94 + $0x20] sm:$0xf]
    %v1355 = vld [vmem:[%s94 + $0x24] sm:$0xff]
    %v1356 = vld [vmem:[%s94 + $0x2c] sm:$0xf]
    %v1357 = vsel %vm1283, %v1349, 0
    %v1358 = vsel %vm1290, %v1350, 0
    %v1359 = vsel %vm1283, %v1351, 0
    %v1360 = vsel %vm1290, %v1352, 0
    %v1361 = vsel %vm1283, %v1353, 0
    %v1362 = vsel %vm1290, %v1354, 0
    %v1363 = vsel %vm1283, %v1355, 0
    %v1364 = vsel %vm1290, %v1356, 0
    %1373 = vrot.lane.b32.xlu0 %v1357, 96
    %v1374 = vpop.permute.xlu0 %1373
    %1375 = vrot.lane.b32.xlu0 %v1358, 96
    %v1376 = vpop.permute.xlu0 %1375
    %1377 = vrot.lane.b32.xlu0 %v1359, 96
    %v1378 = vpop.permute.xlu0 %1377
    %1379 = vrot.lane.b32.xlu0 %v1360, 96
    %v1380 = vpop.permute.xlu0 %1379
    %1381 = vrot.lane.b32.xlu0 %v1361, 96
    %v1382 = vpop.permute.xlu0 %1381
    %1383 = vrot.lane.b32.xlu0 %v1362, 96
    %v1384 = vpop.permute.xlu0 %1383
    %1385 = vrot.lane.b32.xlu0 %v1363, 96
    %v1386 = vpop.permute.xlu0 %1385
    %1387 = vrot.lane.b32.xlu0 %v1364, 96
    %v1388 = vpop.permute.xlu0 %1387
    %v1389 = vrot.slane %v1374, 4
    %v1390 = vrot.slane %v1376, 4
    %v1391 = vrot.slane %v1378, 4
    %v1392 = vrot.slane %v1380, 4
    %v1393 = vrot.slane %v1382, 4
    %v1394 = vrot.slane %v1384, 4
    %v1395 = vrot.slane %v1386, 4
    %v1396 = vrot.slane %v1388, 4
    %v1397 = vsel %vm147, %v1389, %v1390
    %v1398 = vsel %vm1332, %v1374, %v1397
    %v1399 = vsel %vm147, %v1391, %v1392
    %v1400 = vsel %vm1332, %v1378, %v1399
    %v1401 = vsel %vm147, %v1393, %v1394
    %v1402 = vsel %vm1332, %v1382, %v1401
    %v1403 = vsel %vm147, %v1395, %v1396
    %v1404 = vsel %vm1332, %v1386, %v1403
    %1409 = vst [vmem:[%s1344 + $0x8] sm:$0xff] %v1398
    %1410 = vst [vmem:[%s1344 + $0x18] sm:$0xff] %v1400
    %1411 = vst [vmem:[%s1344 + $0x28] sm:$0xff] %v1402
    %1412 = vst [vmem:[%s1344 + $0x38] sm:$0xff] %v1404
    %v1413 = vld [vmem:[#allocation3] sm:$0xff]
    %v1414 = vld [vmem:[#allocation3 + $0x8] sm:$0xf]
    %v1415 = vld [vmem:[#allocation3 + $0xc] sm:$0xff]
    %v1416 = vld [vmem:[#allocation3 + $0x14] sm:$0xf]
    %v1417 = vld [vmem:[#allocation3 + $0x18] sm:$0xff]
    %v1418 = vld [vmem:[#allocation3 + $0x20] sm:$0xf]
    %v1419 = vld [vmem:[#allocation3 + $0x24] sm:$0xff]
    %v1420 = vld [vmem:[#allocation3 + $0x2c] sm:$0xf]
    %1429 = vrot.lane.b32.xlu0 %v1413, 95
    %v1430 = vpop.permute.xlu0 %1429
    %1431 = vrot.lane.b32.xlu0 %v1414, 95
    %v1432 = vpop.permute.xlu0 %1431
    %1433 = vrot.lane.b32.xlu0 %v1415, 95
    %v1434 = vpop.permute.xlu0 %1433
    %1435 = vrot.lane.b32.xlu0 %v1416, 95
    %v1436 = vpop.permute.xlu0 %1435
    %1437 = vrot.lane.b32.xlu0 %v1417, 95
    %v1438 = vpop.permute.xlu0 %1437
    %1439 = vrot.lane.b32.xlu0 %v1418, 95
    %v1440 = vpop.permute.xlu0 %1439
    %1441 = vrot.lane.b32.xlu0 %v1419, 95
    %v1442 = vpop.permute.xlu0 %1441
    %1443 = vrot.lane.b32.xlu0 %v1420, 95
    %v1444 = vpop.permute.xlu0 %1443
    %v1445 = vrot.slane %v1430, 4
    %v1446 = vrot.slane %v1432, 4
    %v1447 = vrot.slane %v1434, 4
    %v1448 = vrot.slane %v1436, 4
    %v1449 = vrot.slane %v1438, 4
    %v1450 = vrot.slane %v1440, 4
    %v1451 = vrot.slane %v1442, 4
    %v1452 = vrot.slane %v1444, 4
    %v1453 = vsel %vm147, %v1445, %v1446
    %vm1454 = vcmask 777216
    %v1455 = vsel %vm1454, %v1430, %v1453
    %v1456 = vsel %vm147, %v1447, %v1448
    %v1457 = vsel %vm1454, %v1434, %v1456
    %v1458 = vsel %vm147, %v1449, %v1450
    %v1459 = vsel %vm1454, %v1438, %v1458
    %v1460 = vsel %vm147, %v1451, %v1452
    %v1461 = vsel %vm1454, %v1442, %v1460
    %1466 = vst [vmem:[%s1344 + $0x40] sm:$0xff] %v1455
    %1467 = vst [vmem:[%s1344 + $0x50] sm:$0xff] %v1457
    %1468 = vst [vmem:[%s1344 + $0x60] sm:$0xff] %v1459
    %1469 = vst [vmem:[%s1344 + $0x70] sm:$0xff] %v1461
    %v1470 = vld [vmem:[%s94] sm:$0xff]
    %v1471 = vld [vmem:[%s94 + $0x8] sm:$0xf]
    %v1472 = vld [vmem:[%s94 + $0xc] sm:$0xff]
    %v1473 = vld [vmem:[%s94 + $0x14] sm:$0xf]
    %v1474 = vld [vmem:[%s94 + $0x18] sm:$0xff]
    %v1475 = vld [vmem:[%s94 + $0x20] sm:$0xf]
    %v1476 = vld [vmem:[%s94 + $0x24] sm:$0xff]
    %v1477 = vld [vmem:[%s94 + $0x2c] sm:$0xf]
    %1486 = vrot.lane.b32.xlu0 %v1470, 95
    %v1487 = vpop.permute.xlu0 %1486
    %1488 = vrot.lane.b32.xlu0 %v1471, 95
    %v1489 = vpop.permute.xlu0 %1488
    %1490 = vrot.lane.b32.xlu0 %v1472, 95
    %v1491 = vpop.permute.xlu0 %1490
    %1492 = vrot.lane.b32.xlu0 %v1473, 95
    %v1493 = vpop.permute.xlu0 %1492
    %1494 = vrot.lane.b32.xlu0 %v1474, 95
    %v1495 = vpop.permute.xlu0 %1494
    %1496 = vrot.lane.b32.xlu0 %v1475, 95
    %v1497 = vpop.permute.xlu0 %1496
    %1498 = vrot.lane.b32.xlu0 %v1476, 95
    %v1499 = vpop.permute.xlu0 %1498
    %1500 = vrot.lane.b32.xlu0 %v1477, 95
    %v1501 = vpop.permute.xlu0 %1500
    %v1502 = vrot.slane %v1487, 4
    %v1503 = vrot.slane %v1489, 4
    %v1504 = vrot.slane %v1491, 4
    %v1505 = vrot.slane %v1493, 4
    %v1506 = vrot.slane %v1495, 4
    %v1507 = vrot.slane %v1497, 4
    %v1508 = vrot.slane %v1499, 4
    %v1509 = vrot.slane %v1501, 4
    %v1510 = vsel %vm147, %v1502, %v1503
    %v1511 = vsel %vm1454, %v1487, %v1510
    %v1512 = vsel %vm147, %v1504, %v1505
    %v1513 = vsel %vm1454, %v1491, %v1512
    %v1514 = vsel %vm147, %v1506, %v1507
    %v1515 = vsel %vm1454, %v1495, %v1514
    %v1516 = vsel %vm147, %v1508, %v1509
    %v1517 = vsel %vm1454, %v1499, %v1516
    %1522 = vst [vmem:[%s1344 + $0x48] sm:$0xff] %v1511
    %1523 = vst [vmem:[%s1344 + $0x58] sm:$0xff] %v1513
    %1524 = vst [vmem:[%s1344 + $0x68] sm:$0xff] %v1515
    %1525 = vst [vmem:[%s1344 + $0x78] sm:$0xff] %v1517
    %v1526 = vld [vmem:[#allocation3] sm:$0xff]
    %v1527 = vld [vmem:[#allocation3 + $0x8] sm:$0xf]
    %v1528 = vld [vmem:[#allocation3 + $0xc] sm:$0xff]
    %v1529 = vld [vmem:[#allocation3 + $0x14] sm:$0xf]
    %v1530 = vld [vmem:[#allocation3 + $0x18] sm:$0xff]
    %v1531 = vld [vmem:[#allocation3 + $0x20] sm:$0xf]
    %v1532 = vld [vmem:[#allocation3 + $0x24] sm:$0xff]
    %v1533 = vld [vmem:[#allocation3 + $0x2c] sm:$0xf]
    %1534 = vrot.lane.b32.xlu0 %v230, 34
    %v1535 = vpop.permute.xlu0 %1534
    %v1536 = vrot.slane %v1535, 4
    %vm1537 = vcmask 277504
    %v1538 = vsel %vm1537, %v1536, %v1535
    %v1539 = vunpack.c.l.b16 %v1538
    %v1540 = vunpack.c.h.b16 %v1538
    %v1541 = vunpack.c.l.b16 0
    %v1542 = vunpack.c.h.b16 0
    %vm1543 = vcmp.ne.s32.totalorder %v1539, %v1541
    %vm1544 = vcmp.ne.s32.totalorder %v1540, %v1542
    %vm1545 = vmpackc.low %vm1544, %vm1543
    %v1546 = vunpack.c.l.b16 %v1536
    %v1547 = vunpack.c.h.b16 %v1536
    %v1548 = vunpack.c.l.b16 0
    %v1549 = vunpack.c.h.b16 0
    %vm1550 = vcmp.ne.s32.totalorder %v1546, %v1548
    %vm1551 = vcmp.ne.s32.totalorder %v1547, %v1549
    %vm1552 = vmpackc.low %vm1551, %vm1550
    %v1553 = vsel %vm1545, %v1526, 0
    %v1554 = vsel %vm1552, %v1527, 0
    %v1555 = vsel %vm1545, %v1528, 0
    %v1556 = vsel %vm1552, %v1529, 0
    %v1557 = vsel %vm1545, %v1530, 0
    %v1558 = vsel %vm1552, %v1531, 0
    %v1559 = vsel %vm1545, %v1532, 0
    %v1560 = vsel %vm1552, %v1533, 0
    %1569 = vrot.lane.b32.xlu0 %v1553, 94
    %v1570 = vpop.permute.xlu0 %1569
    %1571 = vrot.lane.b32.xlu0 %v1554, 94
    %v1572 = vpop.permute.xlu0 %1571
    %1573 = vrot.lane.b32.xlu0 %v1555, 94
    %v1574 = vpop.permute.xlu0 %1573
    %1575 = vrot.lane.b32.xlu0 %v1556, 94
    %v1576 = vpop.permute.xlu0 %1575
    %1577 = vrot.lane.b32.xlu0 %v1557, 94
    %v1578 = vpop.permute.xlu0 %1577
    %1579 = vrot.lane.b32.xlu0 %v1558, 94
    %v1580 = vpop.permute.xlu0 %1579
    %1581 = vrot.lane.b32.xlu0 %v1559, 94
    %v1582 = vpop.permute.xlu0 %1581
    %1583 = vrot.lane.b32.xlu0 %v1560, 94
    %v1584 = vpop.permute.xlu0 %1583
    %v1585 = vrot.slane %v1570, 4
    %v1586 = vrot.slane %v1572, 4
    %v1587 = vrot.slane %v1574, 4
    %v1588 = vrot.slane %v1576, 4
    %v1589 = vrot.slane %v1578, 4
    %v1590 = vrot.slane %v1580, 4
    %v1591 = vrot.slane %v1582, 4
    %v1592 = vrot.slane %v1584, 4
    %v1593 = vsel %vm147, %v1585, %v1586
    %vm1594 = vcmask 769024
    %v1595 = vsel %vm1594, %v1570, %v1593
    %v1596 = vsel %vm147, %v1587, %v1588
    %v1597 = vsel %vm1594, %v1574, %v1596
    %v1598 = vsel %vm147, %v1589, %v1590
    %v1599 = vsel %vm1594, %v1578, %v1598
    %v1600 = vsel %vm147, %v1591, %v1592
    %v1601 = vsel %vm1594, %v1582, %v1600
    %1606 = vst [vmem:[%s1344 + $0x80] sm:$0xff] %v1595
    %1607 = vst [vmem:[%s1344 + $0x90] sm:$0xff] %v1597
    %1608 = vst [vmem:[%s1344 + $0xa0] sm:$0xff] %v1599
    %1609 = vst [vmem:[%s1344 + $0xb0] sm:$0xff] %v1601
    %v1610 = vld [vmem:[%s94] sm:$0xff]
    %v1611 = vld [vmem:[%s94 + $0x8] sm:$0xf]
    %v1612 = vld [vmem:[%s94 + $0xc] sm:$0xff]
    %v1613 = vld [vmem:[%s94 + $0x14] sm:$0xf]
    %v1614 = vld [vmem:[%s94 + $0x18] sm:$0xff]
    %v1615 = vld [vmem:[%s94 + $0x20] sm:$0xf]
    %v1616 = vld [vmem:[%s94 + $0x24] sm:$0xff]
    %v1617 = vld [vmem:[%s94 + $0x2c] sm:$0xf]
    %v1618 = vsel %vm1545, %v1610, 0
    %v1619 = vsel %vm1552, %v1611, 0
    %v1620 = vsel %vm1545, %v1612, 0
    %v1621 = vsel %vm1552, %v1613, 0
    %v1622 = vsel %vm1545, %v1614, 0
    %v1623 = vsel %vm1552, %v1615, 0
    %v1624 = vsel %vm1545, %v1616, 0
    %v1625 = vsel %vm1552, %v1617, 0
    %1634 = vrot.lane.b32.xlu0 %v1618, 94
    %v1635 = vpop.permute.xlu0 %1634
    %1636 = vrot.lane.b32.xlu0 %v1619, 94
    %v1637 = vpop.permute.xlu0 %1636
    %1638 = vrot.lane.b32.xlu0 %v1620, 94
    %v1639 = vpop.permute.xlu0 %1638
    %1640 = vrot.lane.b32.xlu0 %v1621, 94
    %v1641 = vpop.permute.xlu0 %1640
    %1642 = vrot.lane.b32.xlu0 %v1622, 94
    %v1643 = vpop.permute.xlu0 %1642
    %1644 = vrot.lane.b32.xlu0 %v1623, 94
    %v1645 = vpop.permute.xlu0 %1644
    %1646 = vrot.lane.b32.xlu0 %v1624, 94
    %v1647 = vpop.permute.xlu0 %1646
    %1648 = vrot.lane.b32.xlu0 %v1625, 94
    %v1649 = vpop.permute.xlu0 %1648
    %v1650 = vrot.slane %v1635, 4
    %v1651 = vrot.slane %v1637, 4
    %v1652 = vrot.slane %v1639, 4
    %v1653 = vrot.slane %v1641, 4
    %v1654 = vrot.slane %v1643, 4
    %v1655 = vrot.slane %v1645, 4
    %v1656 = vrot.slane %v1647, 4
    %v1657 = vrot.slane %v1649, 4
    %v1658 = vsel %vm147, %v1650, %v1651
    %v1659 = vsel %vm1594, %v1635, %v1658
    %v1660 = vsel %vm147, %v1652, %v1653
    %v1661 = vsel %vm1594, %v1639, %v1660
    %v1662 = vsel %vm147, %v1654, %v1655
    %v1663 = vsel %vm1594, %v1643, %v1662
    %v1664 = vsel %vm147, %v1656, %v1657
    %v1665 = vsel %vm1594, %v1647, %v1664
    %1670 = vst [vmem:[%s1344 + $0x88] sm:$0xff] %v1659
    %1671 = vst [vmem:[%s1344 + $0x98] sm:$0xff] %v1661
    %1672 = vst [vmem:[%s1344 + $0xa8] sm:$0xff] %v1663
    %1673 = vst [vmem:[%s1344 + $0xb8] sm:$0xff] %v1665
    %s1674 = scalar_lea.vmem [#allocation6], 32
    %v1675 = vld [vmem:[%s1674] sm:$0xf]
    %v1676 = vld [vmem:[%s1674 + $0x4] sm:$0xf]
    %v1677 = vld [vmem:[%s1674 + $0x8] sm:$0xf]
    %v1678 = vld [vmem:[%s1674 + $0xc] sm:$0xf]
    %v1679 = vld [vmem:[%s1344] sm:$0xff]
    %v1680 = vld [vmem:[%s1344 + $0x8] sm:$0xff]
    %v1681 = vld [vmem:[%s1344 + $0x10] sm:$0xff]
    %v1682 = vld [vmem:[%s1344 + $0x18] sm:$0xff]
    %v1683 = vld [vmem:[%s1344 + $0x20] sm:$0xff]
    %v1684 = vld [vmem:[%s1344 + $0x28] sm:$0xff]
    %v1685 = vld [vmem:[%s1344 + $0x30] sm:$0xff]
    %v1686 = vld [vmem:[%s1344 + $0x38] sm:$0xff]
    %v1687 = vld [vmem:[%s1344 + $0x40] sm:$0xff]
    %v1688 = vld [vmem:[%s1344 + $0x48] sm:$0xff]
    %v1689 = vld [vmem:[%s1344 + $0x50] sm:$0xff]
    %v1690 = vld [vmem:[%s1344 + $0x58] sm:$0xff]
    %v1691 = vld [vmem:[%s1344 + $0x60] sm:$0xff]
    %v1692 = vld [vmem:[%s1344 + $0x68] sm:$0xff]
    %v1693 = vld [vmem:[%s1344 + $0x70] sm:$0xff]
    %v1694 = vld [vmem:[%s1344 + $0x78] sm:$0xff]
    %v1695 = vld [vmem:[%s1344 + $0x80] sm:$0xff]
    %v1696 = vld [vmem:[%s1344 + $0x88] sm:$0xff]
    %v1697 = vld [vmem:[%s1344 + $0x90] sm:$0xff]
    %v1698 = vld [vmem:[%s1344 + $0x98] sm:$0xff]
    %v1699 = vld [vmem:[%s1344 + $0xa0] sm:$0xff]
    %v1700 = vld [vmem:[%s1344 + $0xa8] sm:$0xff]
    %v1701 = vld [vmem:[%s1344 + $0xb0] sm:$0xff]
    %v1702 = vld [vmem:[%s1344 + $0xb8] sm:$0xff]
    %v1707 = vunpack.c.l.b16 %v1675
    %v1708 = vunpack.c.l.b16 %v1676
    %v1709 = vunpack.c.l.b16 %v1677
    %v1710 = vunpack.c.l.b16 %v1678
    %v1711 = vpack.c.b16 %v1708, %v1707
    %v1712 = vpack.c.b16 %v1710, %v1709
    %v1737 = vunpack.c.l.b16 %v1679
    %v1738 = vunpack.c.h.b16 %v1679
    %v1739 = vunpack.c.l.b16 %v1680
    %v1740 = vunpack.c.h.b16 %v1680
    %v1741 = vunpack.c.l.b16 %v1681
    %v1742 = vunpack.c.h.b16 %v1681
    %v1743 = vunpack.c.l.b16 %v1682
    %v1744 = vunpack.c.h.b16 %v1682
    %v1745 = vunpack.c.l.b16 %v1683
    %v1746 = vunpack.c.h.b16 %v1683
    %v1747 = vunpack.c.l.b16 %v1684
    %v1748 = vunpack.c.h.b16 %v1684
    %v1749 = vunpack.c.l.b16 %v1685
    %v1750 = vunpack.c.h.b16 %v1685
    %v1751 = vunpack.c.l.b16 %v1686
    %v1752 = vunpack.c.h.b16 %v1686
    %v1753 = vunpack.c.l.b16 %v1687
    %v1754 = vunpack.c.h.b16 %v1687
    %v1755 = vunpack.c.l.b16 %v1688
    %v1756 = vunpack.c.h.b16 %v1688
    %v1757 = vunpack.c.l.b16 %v1689
    %v1758 = vunpack.c.h.b16 %v1689
    %v1759 = vunpack.c.l.b16 %v1690
    %v1760 = vunpack.c.h.b16 %v1690
    %v1761 = vunpack.c.l.b16 %v1691
    %v1762 = vunpack.c.h.b16 %v1691
    %v1763 = vunpack.c.l.b16 %v1692
    %v1764 = vunpack.c.h.b16 %v1692
    %v1765 = vunpack.c.l.b16 %v1693
    %v1766 = vunpack.c.h.b16 %v1693
    %v1767 = vunpack.c.l.b16 %v1694
    %v1768 = vunpack.c.h.b16 %v1694
    %v1769 = vunpack.c.l.b16 %v1695
    %v1770 = vunpack.c.h.b16 %v1695
    %v1771 = vunpack.c.l.b16 %v1696
    %v1772 = vunpack.c.h.b16 %v1696
    %v1773 = vunpack.c.l.b16 %v1697
    %v1774 = vunpack.c.h.b16 %v1697
    %v1775 = vunpack.c.l.b16 %v1698
    %v1776 = vunpack.c.h.b16 %v1698
    %v1777 = vunpack.c.l.b16 %v1699
    %v1778 = vunpack.c.h.b16 %v1699
    %v1779 = vunpack.c.l.b16 %v1700
    %v1780 = vunpack.c.h.b16 %v1700
    %v1781 = vunpack.c.l.b16 %v1701
    %v1782 = vunpack.c.h.b16 %v1701
    %v1783 = vunpack.c.l.b16 %v1702
    %v1784 = vunpack.c.h.b16 %v1702
    %v1785 = vpack.c.b16 %v1741, %v1737
    %v1786 = vpack.c.b16 %v1742, %v1738
    %v1787 = vpack.c.b16 %v1743, %v1739
    %v1788 = vpack.c.b16 %v1744, %v1740
    %v1789 = vpack.c.b16 %v1749, %v1745
    %v1790 = vpack.c.b16 %v1750, %v1746
    %v1791 = vpack.c.b16 %v1751, %v1747
    %v1792 = vpack.c.b16 %v1752, %v1748
    %v1793 = vpack.c.b16 %v1757, %v1753
    %v1794 = vpack.c.b16 %v1758, %v1754
    %v1795 = vpack.c.b16 %v1759, %v1755
    %v1796 = vpack.c.b16 %v1760, %v1756
    %v1797 = vpack.c.b16 %v1765, %v1761
    %v1798 = vpack.c.b16 %v1766, %v1762
    %v1799 = vpack.c.b16 %v1767, %v1763
    %v1800 = vpack.c.b16 %v1768, %v1764
    %v1801 = vpack.c.b16 %v1773, %v1769
    %v1802 = vpack.c.b16 %v1774, %v1770
    %v1803 = vpack.c.b16 %v1775, %v1771
    %v1804 = vpack.c.b16 %v1776, %v1772
    %v1805 = vpack.c.b16 %v1781, %v1777
    %v1806 = vpack.c.b16 %v1782, %v1778
    %v1807 = vpack.c.b16 %v1783, %v1779
    %v1808 = vpack.c.b16 %v1784, %v1780
    %v1834 = vsel %vm969, %v1711, 0
    %v1837 = vsel %vm969, %v1712, 0
    %1839 = vmatpush.bf16.msra.mxu0 0
    %1840 = vmatpush.bf16.msra.mxu0 0
    %1841 = vmatpush.bf16.msra.mxu0 %v1805
    %1842 = vmatpush.bf16.msra.mxu0 %v1801
    %1843 = vmatpush.bf16.msra.mxu0 %v1797
    %1844 = vmatpush.bf16.msra.mxu0 %v1793
    %1845 = vmatpush.bf16.msra.mxu0 %v1789
    %1846 = vmatpush.bf16.msra.mxu0 %v1785
    %1847 = vmatmul.bf16.gmra.mxu0 %v1834
    %v1848 = vpop.f32.mrf.mxu0
    %v1849 = vadd.f32 0.0, %v1848
    %v1850 = vpop.f32.mrf.mxu0
    %v1851 = vadd.f32 0.0, %v1850
    %1852 = vmatmul.bf16.gmra.mxu0 %v1837
    %v1853 = vpop.f32.mrf.mxu0
    %v1854 = vadd.f32 0.0, %v1853
    %v1855 = vpop.f32.mrf.mxu0
    %v1856 = vadd.f32 0.0, %v1855
    %1857 = vdwg.mxu0
    %1858 = vmatpush.bf16.msra.mxu0 0
    %1859 = vmatpush.bf16.msra.mxu0 0
    %1860 = vmatpush.bf16.msra.mxu0 %v1806
    %1861 = vmatpush.bf16.msra.mxu0 %v1802
    %1862 = vmatpush.bf16.msra.mxu0 %v1798
    %1863 = vmatpush.bf16.msra.mxu0 %v1794
    %1864 = vmatpush.bf16.msra.mxu0 %v1790
    %1865 = vmatpush.bf16.msra.mxu0 %v1786
    %1866 = vmatmul.bf16.gmra.mxu0 %v1834
    %v1867 = vpop.f32.mrf.mxu0
    %v1868 = vadd.f32 0.0, %v1867
    %v1869 = vpop.f32.mrf.mxu0
    %v1870 = vadd.f32 0.0, %v1869
    %1871 = vmatmul.bf16.gmra.mxu0 %v1837
    %v1872 = vpop.f32.mrf.mxu0
    %v1873 = vadd.f32 0.0, %v1872
    %v1874 = vpop.f32.mrf.mxu0
    %v1875 = vadd.f32 0.0, %v1874
    %1876 = vdwg.mxu0
    %1877 = vmatpush.bf16.msra.mxu0 0
    %1878 = vmatpush.bf16.msra.mxu0 0
    %1879 = vmatpush.bf16.msra.mxu0 %v1807
    %1880 = vmatpush.bf16.msra.mxu0 %v1803
    %1881 = vmatpush.bf16.msra.mxu0 %v1799
    %1882 = vmatpush.bf16.msra.mxu0 %v1795
    %1883 = vmatpush.bf16.msra.mxu0 %v1791
    %1884 = vmatpush.bf16.msra.mxu0 %v1787
    %1885 = vmatmul.bf16.gmra.mxu0 %v1834
    %v1886 = vpop.f32.mrf.mxu0
    %v1887 = vadd.f32 0.0, %v1886
    %v1888 = vpop.f32.mrf.mxu0
    %v1889 = vadd.f32 0.0, %v1888
    %1890 = vmatmul.bf16.gmra.mxu0 %v1837
    %v1891 = vpop.f32.mrf.mxu0
    %v1892 = vadd.f32 0.0, %v1891
    %v1893 = vpop.f32.mrf.mxu0
    %v1894 = vadd.f32 0.0, %v1893
    %1895 = vdwg.mxu0
    %1896 = vmatpush.bf16.msra.mxu0 0
    %1897 = vmatpush.bf16.msra.mxu0 0
    %1898 = vmatpush.bf16.msra.mxu0 %v1808
    %1899 = vmatpush.bf16.msra.mxu0 %v1804
    %1900 = vmatpush.bf16.msra.mxu0 %v1800
    %1901 = vmatpush.bf16.msra.mxu0 %v1796
    %1902 = vmatpush.bf16.msra.mxu0 %v1792
    %1903 = vmatpush.bf16.msra.mxu0 %v1788
    %1904 = vmatmul.bf16.gmra.mxu0 %v1834
    %v1905 = vpop.f32.mrf.mxu0
    %v1906 = vadd.f32 0.0, %v1905
    %v1907 = vpop.f32.mrf.mxu0
    %v1908 = vadd.f32 0.0, %v1907
    %1909 = vmatmul.bf16.gmra.mxu0 %v1837
    %v1910 = vpop.f32.mrf.mxu0
    %v1911 = vadd.f32 0.0, %v1910
    %v1912 = vpop.f32.mrf.mxu0
    %v1913 = vadd.f32 0.0, %v1912
    %1914 = vdwg.mxu0
    %v1915 = vadd.f32 %v1198, %v1849
    %v1916 = vadd.f32 %v1217, %v1868
    %v1917 = vadd.f32 %v1236, %v1887
    %v1918 = vadd.f32 %v1255, %v1906
    %v1919 = vadd.f32 %v1200, %v1851
    %v1920 = vadd.f32 %v1219, %v1870
    %v1921 = vadd.f32 %v1238, %v1889
    %v1922 = vadd.f32 %v1257, %v1908
    %v1923 = vadd.f32 %v1203, %v1854
    %v1924 = vadd.f32 %v1222, %v1873
    %v1925 = vadd.f32 %v1241, %v1892
    %v1926 = vadd.f32 %v1260, %v1911
    %v1927 = vadd.f32 %v1205, %v1856
    %v1928 = vadd.f32 %v1224, %v1875
    %v1929 = vadd.f32 %v1243, %v1894
    %v1930 = vadd.f32 %v1262, %v1913
    %v1931 = vld [vmem:[%s2] sm:$0xff]
    %v1932 = vld [vmem:[%s2 + $0x8] sm:$0xff]
    %v1933 = vld [vmem:[%s2 + $0x10] sm:$0xff]
    %v1934 = vld [vmem:[%s2 + $0x18] sm:$0xff]
    %1936 = vset.pattern.permute.xlu0 0
    %1937 = vperm.xlu0 %1936, %v1931
    %v1938 = vpop.permute.xlu0 %1937
    %1941 = vset.pattern.permute.xlu0 0
    %1942 = vperm.xlu0 %1941, %v1932
    %v1943 = vpop.permute.xlu0 %1942
    %1946 = vset.pattern.permute.xlu0 0
    %1947 = vperm.xlu0 %1946, %v1933
    %v1948 = vpop.permute.xlu0 %1947
    %1951 = vset.pattern.permute.xlu0 0
    %1952 = vperm.xlu0 %1951, %v1934
    %v1953 = vpop.permute.xlu0 %1952
    %v1955 = vadd.f32 %v1915, %v1938
    %v1956 = vadd.f32 %v1916, %v1938
    %v1957 = vadd.f32 %v1917, %v1938
    %v1958 = vadd.f32 %v1918, %v1938
    %v1959 = vadd.f32 %v1919, %v1943
    %v1960 = vadd.f32 %v1920, %v1943
    %v1961 = vadd.f32 %v1921, %v1943
    %v1962 = vadd.f32 %v1922, %v1943
    %v1963 = vadd.f32 %v1923, %v1948
    %v1964 = vadd.f32 %v1924, %v1948
    %v1965 = vadd.f32 %v1925, %v1948
    %v1966 = vadd.f32 %v1926, %v1948
    %v1967 = vadd.f32 %v1927, %v1953
    %v1968 = vadd.f32 %v1928, %v1953
    %v1969 = vadd.f32 %v1929, %v1953
    %v1970 = vadd.f32 %v1930, %v1953
    %v1971 = vmax.f32 %v1955, 0.0
    %v1972 = vmax.f32 %v1956, 0.0
    %v1973 = vmax.f32 %v1957, 0.0
    %v1974 = vmax.f32 %v1958, 0.0
    %v1975 = vmax.f32 %v1959, 0.0
    %v1976 = vmax.f32 %v1960, 0.0
    %v1977 = vmax.f32 %v1961, 0.0
    %v1978 = vmax.f32 %v1962, 0.0
    %v1979 = vmax.f32 %v1963, 0.0
    %v1980 = vmax.f32 %v1964, 0.0
    %v1981 = vmax.f32 %v1965, 0.0
    %v1982 = vmax.f32 %v1966, 0.0
    %v1983 = vmax.f32 %v1967, 0.0
    %v1984 = vmax.f32 %v1968, 0.0
    %v1985 = vmax.f32 %v1969, 0.0
    %v1986 = vmax.f32 %v1970, 0.0
    %1987 = vst [vmem:[#allocation8] sm:$0xff] %v1971
    %1988 = vst [vmem:[#allocation8 + $0x8] sm:$0xff] %v1972
    %1989 = vst [vmem:[#allocation8 + $0x10] sm:$0xff] %v1975
    %1990 = vst [vmem:[#allocation8 + $0x18] sm:$0xff] %v1976
    %1991 = vst [vmem:[#allocation8 + $0x20] sm:$0xff] %v1979
    %1992 = vst [vmem:[#allocation8 + $0x28] sm:$0xff] %v1980
    %1993 = vst [vmem:[#allocation8 + $0x30] sm:$0xff] %v1983
    %1994 = vst [vmem:[#allocation8 + $0x38] sm:$0xff] %v1984
    %s1995 = scalar_lea.vmem [#allocation8], 64
    %1996 = vst [vmem:[%s1995] sm:$0xff] %v1973
    %1997 = vst [vmem:[%s1995 + $0x8] sm:$0xff] %v1974
    %1998 = vst [vmem:[%s1995 + $0x10] sm:$0xff] %v1977
    %1999 = vst [vmem:[%s1995 + $0x18] sm:$0xff] %v1978
    %2000 = vst [vmem:[%s1995 + $0x20] sm:$0xff] %v1981
    %2001 = vst [vmem:[%s1995 + $0x28] sm:$0xff] %v1982
    %2002 = vst [vmem:[%s1995 + $0x30] sm:$0xff] %v1985
    %2003 = vst [vmem:[%s1995 + $0x38] sm:$0xff] %v1986
    // Predicated region
    $region22: #{tpu_custom_call.1} parent=1 // pred_check
      _
    $region23: #{tpu_custom_call.1} parent=1 // pred_check_branch
      %2005 = sbr.rel (0) target = $region25
    $region24: #{tpu_custom_call.1} parent=1 // pred_region
      %2007 = vsyncadd [#allocation5], 0
      %s2008 = sshll.u32 [#allocation8], 4
      %s2009 = int_to_ptr.vmem [resolvable:$true] %s2008
      %s2010 = sshll.u32 %s3, 4
      %s2011 = int_to_ptr.hbm [resolvable:$true] %s2010
      %2016 = dma.vmem_to_hbm [thread:$0]  %s2009, 2048, %s2011, [#allocation5], 256, 256, 16
    $region25: #{tpu_custom_call.1} parent=1 // pred_fallthru
      _
    // Predicated region
    $region26: #{tpu_custom_call.1} parent=1 // pred_check
      _
    $region27: #{tpu_custom_call.1} parent=1 // pred_check_branch
      %2018 = sbr.rel (0) target = $region29
    $region28: #{tpu_custom_call.1} parent=1 // pred_region
      %2020 = dma.done [#allocation5], 2048
    $region29: #{tpu_custom_call.1} parent=1 // pred_fallthru
      _
    %2021 = vsyncpa [#allocation4], 1
    %2022 = vsyncpa [#allocation7], 1
    %2023 = vsyncpa [#allocation5], 1

</llo_original>
